<compile_context>
chip_gen: v5e
topology: v5e:2x2
jax: 0.10.0
libtpu: 0.0.40
codegen_flags: <defaults>
</compile_context>

<pallas_src>
import math

import jax
import jax.numpy as jnp
import numpy as np
from jax import lax
from jax.experimental import pallas as pl
from jax.experimental.pallas import tpu as pltpu

# ----------------------------- configuration --------------------------------
D_MODEL = 16         # number of channels
EMB_DIM = 3          # positional-embedding dim (odd, >= 3)
ORDER = 16           # width of the filter MLP
SEQ_LEN = 128        # L
BATCH = 2
NUM_INNER_MLPS = 2
W_FREQ = 1.0         # Sin activation frequency w
SHIFT = 0.05         # ExponentialModulation shift
FAST_DECAY_PCT = 0.3
SLOW_DECAY_PCT = 1.5
TARGET = 0.01
CHANNEL_BLOCK = 8    # channels handled per grid step (8-aligned sublane block)


# ----------------------------- in-kernel building blocks ---------------------
def _implicit_filter(zt_ref, tt_ref, w0t_ref, b0_ref, wit_ref, bit_ref,
                     wot_ref, freq_ref, delta_ref):
    """Implicit filter MLP + Sin + exponential modulation.

    Everything is in "transposed" orientation (features on sublanes, positions
    on the 128-wide lane axis) so all intermediates and the result are
    lane-dense.  Returns (DC, L) f32 where DC = wot_ref.shape[0].
    """
    freq = freq_ref[...]                                            # (ORDER, 1)
    h = jnp.dot(w0t_ref[...], zt_ref[...],
                preferred_element_type=jnp.float32) + b0_ref[...]   # (ORDER, L)
    h = jnp.sin(freq * h)
    for i in range(NUM_INNER_MLPS):                                 # static unroll
        h = jnp.dot(wit_ref[i], h,
                    preferred_element_type=jnp.float32) + bit_ref[i]
        h = jnp.sin(freq * h)
    k = jnp.dot(wot_ref[...], h,
                preferred_element_type=jnp.float32)                 # (DC, L)
    # ExponentialModulation: k * (exp(-t*|deltas|) + shift)
    decay = jnp.exp(-tt_ref[...] * jnp.abs(delta_ref[...]))         # (DC, L)
    return k * (decay + SHIFT)


def _causal_conv_write(k_blk, x_ref, bias_ref, o_ref):
    """Exact causal convolution + bias residual for one channel block.

    k_blk:  (DC, L) f32 filter block in natural position order.
    x_ref / o_ref: (B, DC, L) blocks of the (B, d_model, L) tensors.
    bias_ref:      (d_model,) f32 in SMEM.

    Per channel c the kernel builds T_c^T[s, t] = k_c[t - s] (t >= s) entirely
    in VMEM from a single (1, L) filter row via a strided pltpu.roll, then
    computes y_c = x_c @ T_c^T so the MXU output is already lane-dense on the
    time axis (no transpose, no concat).
    """
    DC, L = k_blk.shape
    B = x_ref.shape[0]
    d0 = pl.program_id(0) * DC

    x_blk = x_ref[...]                                              # (B, DC, L) f32
    x_bf = x_blk.astype(jnp.bfloat16)                               # bf16 MXU operand

    # Causal (upper-triangular) mask, hoisted out of the channel loop:
    #   mask[s, t] = (t >= s); s on sublanes, t on lanes.
    s_idx = lax.broadcasted_iota(jnp.int32, (L, L), 0)
    t_idx = lax.broadcasted_iota(jnp.int32, (L, L), 1)
    causal = t_idx >= s_idx

    for c in range(DC):                                             # static unroll
        # In-VMEM transposed Toeplitz from one (1, L) filter row:
        #   rows[s, j] = k_c[j];  roll row s by s (stride trick) ->
        #   toeT[s, t] = k_c[(t - s) % L];  mask t >= s.
        rows = jnp.broadcast_to(k_blk[c:c + 1, :], (L, L))
        toeT = pltpu.roll(rows, 0, 1, stride=1, stride_axis=0)
        toeT = jnp.where(causal, toeT, 0.0).astype(jnp.bfloat16)
        x_c = x_blk[:, c, :]                                        # (B, L) f32
        # MXU matmul, output lane-dense on time:
        #   y_c[b, t] = sum_{s<=t} x[b, c, s] * k_c[t - s]
        y_c = jnp.dot(x_bf[:, c, :], toeT,
                      preferred_element_type=jnp.float32)           # (B, L) f32
        o_ref[:, c, :] = (y_c + x_c * bias_ref[d0 + c]).astype(o_ref.dtype)


# ----------------------------- Pallas kernels -------------------------------
def hyena_fused_kernel(zt_ref, tt_ref, w0t_ref, b0_ref, wit_ref, bit_ref,
                       wot_ref, freq_ref, delta_ref, x_ref, bias_ref, o_ref):
    """Fused HyenaFilter.forward: implicit filter + causal conv + bias."""
    k_blk = _implicit_filter(zt_ref, tt_ref, w0t_ref, b0_ref, wit_ref, bit_ref,
                             wot_ref, freq_ref, delta_ref)          # (DC, L)
    _causal_conv_write(k_blk, x_ref, bias_ref, o_ref)


def filter_kernel(zt_ref, tt_ref, w0t_ref, b0_ref, wit_ref, bit_ref,
                  wot_ref, freq_ref, delta_ref, k_ref):
    """Standalone HyenaFilter.filter(L): emits k lane-dense as (d_model, L)."""
    k_ref[...] = _implicit_filter(zt_ref, tt_ref, w0t_ref, b0_ref, wit_ref,
                                  bit_ref, wot_ref, freq_ref, delta_ref
                                  ).astype(k_ref.dtype)


def fftconv_kernel(k_ref, x_ref, bias_ref, o_ref):
    """Conv-only path (externally supplied filter in natural (d_model, L) order)."""
    _causal_conv_write(k_ref[...], x_ref, bias_ref, o_ref)


# ----------------------------- wrappers --------------------------------------
def _kernel_filter_inputs(params, L):
    """Tiny host-side parameter prep (O(order^2 + emb*L)); everything is laid
    out transposed so positions sit on the lane axis inside the kernels."""
    zT = jnp.transpose(params["z"][0, :L])                   # (emb, L)
    t_row = params["t"][0, :L, 0][None, :]                   # (1, L)
    w0t = jnp.transpose(params["w0"])                        # (order, emb)
    b0 = jnp.transpose(params["b0"])                         # (order, 1)
    wit = jnp.transpose(params["wi"], (0, 2, 1))             # (n, order, order)
    bit = jnp.transpose(params["bi"], (0, 2, 1))             # (n, order, 1)
    wot = jnp.transpose(params["wo"])                        # (d_model, order)
    freq = jnp.transpose(params["freq"])                     # (order, 1)
    deltas = jnp.transpose(params["deltas"])                 # (d_model, 1)
    return zT, t_row, w0t, b0, wit, bit, wot, freq, deltas


def filter_pallas(params, L):
    """HyenaFilter.filter(L) -> k with shape (d_model, L), lane-dense, one step."""
    zT, t_row, w0t, b0, wit, bit, wot, freq, deltas = _kernel_filter_inputs(params, L)
    c2 = lambda i: (0, 0)
    c3 = lambda i: (0, 0, 0)
    return pl.pallas_call(
        filter_kernel,
        out_shape=jax.ShapeDtypeStruct((D_MODEL, L), jnp.float32),
        grid=(1,),                                           # TL = L: single grid step
        in_specs=[
            pl.BlockSpec((EMB_DIM, L), c2),
            pl.BlockSpec((1, L), c2),
            pl.BlockSpec((ORDER, EMB_DIM), c2),
            pl.BlockSpec((ORDER, 1), c2),
            pl.BlockSpec((NUM_INNER_MLPS, ORDER, ORDER), c3),
            pl.BlockSpec((NUM_INNER_MLPS, ORDER, 1), c3),
            pl.BlockSpec((D_MODEL, ORDER), c2),
            pl.BlockSpec((ORDER, 1), c2),
            pl.BlockSpec((D_MODEL, 1), c2),
        ],
        out_specs=pl.BlockSpec((D_MODEL, L), c2),
    )(zT, t_row, w0t, b0, wit, bit, wot, freq, deltas)


def fftconv_fused_pallas(params, x, L, bias_vec):
    """Fused forward: filter computed in-kernel, causal conv, bias residual."""
    B, Dm, Lx = x.shape
    assert Dm == D_MODEL and Lx == L
    DC = min(Dm, CHANNEL_BLOCK)
    assert Dm % DC == 0
    zT, t_row, w0t, b0, wit, bit, wot, freq, deltas = _kernel_filter_inputs(params, L)
    c2 = lambda i: (0, 0)
    c3 = lambda i: (0, 0, 0)
    return pl.pallas_call(
        hyena_fused_kernel,
        out_shape=jax.ShapeDtypeStruct((B, Dm, L), x.dtype),
        grid=(Dm // DC,),                                    # channel blocks
        in_specs=[
            pl.BlockSpec((EMB_DIM, L), c2),
            pl.BlockSpec((1, L), c2),
            pl.BlockSpec((ORDER, EMB_DIM), c2),
            pl.BlockSpec((ORDER, 1), c2),
            pl.BlockSpec((NUM_INNER_MLPS, ORDER, ORDER), c3),
            pl.BlockSpec((NUM_INNER_MLPS, ORDER, 1), c3),
            pl.BlockSpec((DC, ORDER), lambda i: (i, 0)),     # per-block output proj
            pl.BlockSpec((ORDER, 1), c2),
            pl.BlockSpec((DC, 1), lambda i: (i, 0)),         # per-block deltas
            pl.BlockSpec((B, DC, L), lambda i: (0, i, 0)),   # x, native NCL layout
            pl.BlockSpec(memory_space=pltpu.MemorySpace.SMEM),  # bias scalars
        ],
        out_specs=pl.BlockSpec((B, DC, L), lambda i: (0, i, 0)),
        compiler_params=pltpu.CompilerParams(dimension_semantics=("parallel",)),
    )(zT, t_row, w0t, b0, wit, bit, wot, freq, deltas, x,
      bias_vec.astype(jnp.float32))


def fftconv_pallas(x, k, bias_vec):
    """fftconv with an externally supplied filter k of shape (d_model, L)."""
    B, Dm, L = x.shape
    DC = min(Dm, CHANNEL_BLOCK)
    assert Dm % DC == 0
    return pl.pallas_call(
        fftconv_kernel,
        out_shape=jax.ShapeDtypeStruct((B, Dm, L), x.dtype),
        grid=(Dm // DC,),
        in_specs=[
            pl.BlockSpec((DC, L), lambda i: (i, 0)),
            pl.BlockSpec((B, DC, L), lambda i: (0, i, 0)),
            pl.BlockSpec(memory_space=pltpu.MemorySpace.SMEM),
        ],
        out_specs=pl.BlockSpec((B, DC, L), lambda i: (0, i, 0)),
        compiler_params=pltpu.CompilerParams(dimension_semantics=("parallel",)),
    )(k.astype(jnp.float32), x, bias_vec.astype(jnp.float32))


def hyena_filter_filter(params, L):
    """Mirrors HyenaFilter.filter(L) -> (1, L, d_model).  The kernel itself emits
    the lane-dense (d_model, L) layout; this transpose is torch-API parity only
    and is not on the forward hot path (forward() fuses the filter)."""
    return jnp.transpose(filter_pallas(params, L))[None]


def hyena_filter_forward(params, x, L, k=None, bias=None):
    """Mirrors HyenaFilter.forward(x, L, k, bias).  x is NCL (B, d_model, L).
    If k is given it is expected in the canonical Hyena (d_model, L) layout."""
    if bias is None:
        bias = params["bias"]
    if k is None:
        return fftconv_fused_pallas(params, x, L, bias)      # fused filter + conv
    return fftconv_pallas(x, k, bias)                        # conv-only path


# ----------------------------- parameter init --------------------------------
def init_params(key):
    ks = jax.random.split(key, 6)

    def lin(k_, fi, fo, use_bias=True):
        bound = 1.0 / math.sqrt(fi)
        kw, kb = jax.random.split(k_)
        w = jax.random.uniform(kw, (fi, fo), jnp.float32, -bound, bound)
        b = jax.random.uniform(kb, (1, fo), jnp.float32, -bound, bound) if use_bias else None
        return w, b

    w0, b0 = lin(ks[0], EMB_DIM, ORDER)
    wi_list, bi_list = [], []
    for i in range(NUM_INNER_MLPS):
        w, b = lin(ks[1 + i], ORDER, ORDER)
        wi_list.append(w)
        bi_list.append(b)
    wo, _ = lin(ks[3], ORDER, D_MODEL, use_bias=False)
    freq = W_FREQ * jnp.ones((1, ORDER), jnp.float32)               # Sin.freq
    bias_param = jax.random.normal(ks[4], (D_MODEL,), jnp.float32)  # self.bias

    # PositionalEmbedding (deterministic formula from the module)
    t = jnp.linspace(0.0, 1.0, SEQ_LEN, dtype=jnp.float32)[None, :, None]
    bands = (EMB_DIM - 1) // 2
    t_rescaled = jnp.linspace(0.0, SEQ_LEN - 1, SEQ_LEN, dtype=jnp.float32)[None, :, None]
    w_ang = 2.0 * math.pi * t_rescaled / SEQ_LEN
    f = jnp.linspace(1e-4, float(bands - 1), bands, dtype=jnp.float32)[None, None]
    theta = f * w_ang                                               # (1, L, bands)
    z = jnp.concatenate([t, jnp.cos(theta), -jnp.sin(theta)], axis=-1)  # exp(-i*theta)

    # ExponentialModulation deltas
    max_decay = math.log(TARGET) / FAST_DECAY_PCT
    min_decay = math.log(TARGET) / SLOW_DECAY_PCT
    deltas = jnp.linspace(min_decay, max_decay, D_MODEL, dtype=jnp.float32)[None]

    return dict(w0=w0, b0=b0, wi=jnp.stack(wi_list), bi=jnp.stack(bi_list),
                wo=wo, freq=freq, bias=bias_param, z=z, t=t, deltas=deltas)


# ----------------------------- pure-JAX reference ----------------------------
def reference_filter(params, L):
    z = params["z"][0, :L]
    t = params["t"][0, :L]
    h = jnp.dot(z, params["w0"]) + params["b0"]
    h = jnp.sin(params["freq"] * h)
    for i in range(NUM_INNER_MLPS):
        h = jnp.dot(h, params["wi"][i]) + params["bi"][i]
        h = jnp.sin(params["freq"] * h)
    h = jnp.dot(h, params["wo"])
    decay = jnp.exp(-t * jnp.abs(params["deltas"]))
    return h * (decay + SHIFT)                                      # (L, d_model)


def reference_fftconv(u, k, bias_vec):
    L = u.shape[-1]
    n = 2 * L
    k_f = jnp.fft.rfft(k, n=n) / n
    u_f = jnp.fft.rfft(u, n=n)
    y = jnp.fft.irfft(u_f * k_f, n=n, norm="forward")[..., :L]
    return y + u * bias_vec[:, None]


# ----------------------------- main ------------------------------------------
if __name__ == "__main__":
    key = jax.random.PRNGKey(0)
    pkey, xkey = jax.random.split(key)
    params = init_params(pkey)

    # layout: x is NCL (batch, d_model, seq) like the PyTorch module's conv input.
    x = jax.random.normal(xkey, (BATCH, D_MODEL, SEQ_LEN), jnp.float32)
    L = SEQ_LEN

    # default path: single fused kernel (filter + causal conv + bias)
    out = hyena_filter_forward(params, x, L)
    out = jax.block_until_ready(out)
    assert out.shape == (BATCH, D_MODEL, SEQ_LEN) and out.dtype == x.dtype

    # pure-JAX (FFT-based, torch-faithful) references
    k_ref = reference_filter(params, L)                             # (L, d_model)
    ref = reference_fftconv(x, k_ref.T, params["bias"])
    np.testing.assert_allclose(np.asarray(out), np.asarray(ref), rtol=1e-2, atol=1e-2)

    # standalone filter kernel: lane-dense (d_model, L) output
    k_dl = jax.block_until_ready(filter_pallas(params, L))
    np.testing.assert_allclose(np.asarray(k_dl), np.asarray(k_ref.T),
                               rtol=1e-3, atol=1e-3)
    assert hyena_filter_filter(params, L).shape == (1, L, D_MODEL)

    # external-filter path (conv-only kernel), must agree with the fused path
    out_ext = hyena_filter_forward(params, x, L, k=k_dl, bias=params["bias"])
    np.testing.assert_allclose(np.asarray(out_ext), np.asarray(ref),
                               rtol=1e-2, atol=1e-2)

    print("KERNEL_OK")
</pallas_src>

<mosaic_0001>
module attributes {stable_mosaic.version = 11 : i64} {
  func.func @hyena_fused_kernel(%arg0: i32, %arg1: memref<3x128xf32, #tpu.memory_space<vmem>>, %arg2: memref<1x128xf32, #tpu.memory_space<vmem>>, %arg3: memref<16x3xf32, #tpu.memory_space<vmem>>, %arg4: memref<16x1xf32, #tpu.memory_space<vmem>>, %arg5: memref<2x16x16xf32, #tpu.memory_space<vmem>>, %arg6: memref<2x16x1xf32, #tpu.memory_space<vmem>>, %arg7: memref<8x16xf32, #tpu.memory_space<vmem>>, %arg8: memref<16x1xf32, #tpu.memory_space<vmem>>, %arg9: memref<8x1xf32, #tpu.memory_space<vmem>>, %arg10: memref<2x8x128xf32, #tpu.memory_space<vmem>>, %arg11: memref<16xf32, #tpu.memory_space<smem>>, %arg12: memref<2x8x128xf32, #tpu.memory_space<vmem>>) attributes {dimension_semantics = [#tpu.dimension_semantics<parallel>], iteration_bounds = array<i64: 2>, scalar_prefetch = 0 : i64, scratch_operands = 0 : i64, tpu.core_type = #tpu.core_type<tc>, window_params = [{pipeline_mode = #tpu.pipeline_mode<synchronous>, transform_indices = @transform_0, window_bounds = array<i64: 3, 128>}, {pipeline_mode = #tpu.pipeline_mode<synchronous>, transform_indices = @transform_1, window_bounds = array<i64: 1, 128>}, {pipeline_mode = #tpu.pipeline_mode<synchronous>, transform_indices = @transform_2, window_bounds = array<i64: 16, 3>}, {pipeline_mode = #tpu.pipeline_mode<synchronous>, transform_indices = @transform_3, window_bounds = array<i64: 16, 1>}, {pipeline_mode = #tpu.pipeline_mode<synchronous>, transform_indices = @transform_4, window_bounds = array<i64: 2, 16, 16>}, {pipeline_mode = #tpu.pipeline_mode<synchronous>, transform_indices = @transform_5, window_bounds = array<i64: 2, 16, 1>}, {transform_indices = @transform_6, window_bounds = array<i64: 8, 16>}, {pipeline_mode = #tpu.pipeline_mode<synchronous>, transform_indices = @transform_7, window_bounds = array<i64: 16, 1>}, {transform_indices = @transform_8, window_bounds = array<i64: 8, 1>}, {transform_indices = @transform_9, window_bounds = array<i64: 2, 8, 128>}, {transform_indices = @transform_10, window_bounds = array<i64: 16>}, {transform_indices = @transform_11, window_bounds = array<i64: 2, 8, 128>}]} {
    %c0 = arith.constant 0 : index
    %c0_0 = arith.constant 0 : index
    %0 = vector.load %arg8[%c0, %c0_0] : memref<16x1xf32, #tpu.memory_space<vmem>>, vector<16x1xf32>
    %c0_1 = arith.constant 0 : index
    %c0_2 = arith.constant 0 : index
    %1 = vector.load %arg3[%c0_1, %c0_2] : memref<16x3xf32, #tpu.memory_space<vmem>>, vector<16x3xf32>
    %c0_3 = arith.constant 0 : index
    %c0_4 = arith.constant 0 : index
    %2 = vector.load %arg1[%c0_3, %c0_4] : memref<3x128xf32, #tpu.memory_space<vmem>>, vector<3x128xf32>
    %cst = arith.constant dense<0.000000e+00> : vector<16x128xf32>
    %3 = tpu.matmul %1, %2, %cst {dimension_numbers = #tpu.dot_dimension_numbers<[1], [0], [0], [1], [0, 0, 1, 1], [], []>} : vector<16x3xf32>, vector<3x128xf32>, vector<16x128xf32> -> vector<16x128xf32>
    %c0_5 = arith.constant 0 : index
    %c0_6 = arith.constant 0 : index
    %4 = vector.load %arg4[%c0_5, %c0_6] : memref<16x1xf32, #tpu.memory_space<vmem>>, vector<16x1xf32>
    %5 = vector.broadcast %4 : vector<16x1xf32> to vector<16x128xf32>
    %6 = arith.addf %3, %5 : vector<16x128xf32>
    %7 = vector.broadcast %0 : vector<16x1xf32> to vector<16x128xf32>
    %8 = arith.mulf %7, %6 : vector<16x128xf32>
    %9 = math.sin %8 : vector<16x128xf32>
    %c0_7 = arith.constant 0 : index
    %c0_8 = arith.constant 0 : index
    %c0_9 = arith.constant 0 : index
    %10 = vector.load %arg5[%c0_7, %c0_8, %c0_9] : memref<2x16x16xf32, #tpu.memory_space<vmem>>, vector<1x16x16xf32>
    %11 = vector.shape_cast %10 : vector<1x16x16xf32> to vector<16x16xf32>
    %cst_10 = arith.constant dense<0.000000e+00> : vector<16x128xf32>
    %12 = tpu.matmul %11, %9, %cst_10 {dimension_numbers = #tpu.dot_dimension_numbers<[1], [0], [0], [1], [0, 0, 1, 1], [], []>} : vector<16x16xf32>, vector<16x128xf32>, vector<16x128xf32> -> vector<16x128xf32>
    %c0_11 = arith.constant 0 : index
    %c0_12 = arith.constant 0 : index
    %c0_13 = arith.constant 0 : index
    %13 = vector.load %arg6[%c0_11, %c0_12, %c0_13] : memref<2x16x1xf32, #tpu.memory_space<vmem>>, vector<1x16x1xf32>
    %14 = vector.shape_cast %13 : vector<1x16x1xf32> to vector<16x1xf32>
    %15 = vector.broadcast %14 : vector<16x1xf32> to vector<16x128xf32>
    %16 = arith.addf %12, %15 : vector<16x128xf32>
    %17 = vector.broadcast %0 : vector<16x1xf32> to vector<16x128xf32>
    %18 = arith.mulf %17, %16 : vector<16x128xf32>
    %19 = math.sin %18 : vector<16x128xf32>
    %c1 = arith.constant 1 : index
    %c0_14 = arith.constant 0 : index
    %c0_15 = arith.constant 0 : index
    %20 = vector.load %arg5[%c1, %c0_14, %c0_15] : memref<2x16x16xf32, #tpu.memory_space<vmem>>, vector<1x16x16xf32>
    %21 = vector.shape_cast %20 : vector<1x16x16xf32> to vector<16x16xf32>
    %cst_16 = arith.constant dense<0.000000e+00> : vector<16x128xf32>
    %22 = tpu.matmul %21, %19, %cst_16 {dimension_numbers = #tpu.dot_dimension_numbers<[1], [0], [0], [1], [0, 0, 1, 1], [], []>} : vector<16x16xf32>, vector<16x128xf32>, vector<16x128xf32> -> vector<16x128xf32>
    %c1_17 = arith.constant 1 : index
    %c0_18 = arith.constant 0 : index
    %c0_19 = arith.constant 0 : index
    %23 = vector.load %arg6[%c1_17, %c0_18, %c0_19] : memref<2x16x1xf32, #tpu.memory_space<vmem>>, vector<1x16x1xf32>
    %24 = vector.shape_cast %23 : vector<1x16x1xf32> to vector<16x1xf32>
    %25 = vector.broadcast %24 : vector<16x1xf32> to vector<16x128xf32>
    %26 = arith.addf %22, %25 : vector<16x128xf32>
    %27 = vector.broadcast %0 : vector<16x1xf32> to vector<16x128xf32>
    %28 = arith.mulf %27, %26 : vector<16x128xf32>
    %29 = math.sin %28 : vector<16x128xf32>
    %c0_20 = arith.constant 0 : index
    %c0_21 = arith.constant 0 : index
    %30 = vector.load %arg7[%c0_20, %c0_21] : memref<8x16xf32, #tpu.memory_space<vmem>>, vector<8x16xf32>
    %cst_22 = arith.constant dense<0.000000e+00> : vector<8x128xf32>
    %31 = tpu.matmul %30, %29, %cst_22 {dimension_numbers = #tpu.dot_dimension_numbers<[1], [0], [0], [1], [0, 0, 1, 1], [], []>} : vector<8x16xf32>, vector<16x128xf32>, vector<8x128xf32> -> vector<8x128xf32>
    %c0_23 = arith.constant 0 : index
    %c0_24 = arith.constant 0 : index
    %32 = vector.load %arg2[%c0_23, %c0_24] : memref<1x128xf32, #tpu.memory_space<vmem>>, vector<1x128xf32>
    %cst_25 = arith.constant 0.000000e+00 : f32
    %33 = vector.broadcast %cst_25 : f32 to vector<1x128xf32>
    %34 = arith.subf %33, %32 : vector<1x128xf32>
    %c0_26 = arith.constant 0 : index
    %c0_27 = arith.constant 0 : index
    %35 = vector.load %arg9[%c0_26, %c0_27] : memref<8x1xf32, #tpu.memory_space<vmem>>, vector<8x1xf32>
    %36 = math.absf %35 : vector<8x1xf32>
    %37 = vector.broadcast %34 : vector<1x128xf32> to vector<8x128xf32>
    %38 = vector.broadcast %36 : vector<8x1xf32> to vector<8x128xf32>
    %39 = arith.mulf %37, %38 : vector<8x128xf32>
    %40 = math.exp %39 : vector<8x128xf32>
    %cst_28 = arith.constant 5.000000e-02 : f32
    %41 = vector.broadcast %cst_28 : f32 to vector<8x128xf32>
    %42 = arith.addf %40, %41 : vector<8x128xf32>
    %43 = arith.mulf %31, %42 : vector<8x128xf32>
    %c8_i32 = arith.constant 8 : i32
    %44 = arith.muli %arg0, %c8_i32 : i32
    %c0_29 = arith.constant 0 : index
    %c0_30 = arith.constant 0 : index
    %c0_31 = arith.constant 0 : index
    %45 = vector.load %arg10[%c0_29, %c0_30, %c0_31] : memref<2x8x128xf32, #tpu.memory_space<vmem>>, vector<2x8x128xf32>
    %46 = arith.truncf %45 : vector<2x8x128xf32> to vector<2x8x128xbf16>
    %47 = tpu.iota {dimensions = array<i32: 0>} : vector<128x128xi32>
    %48 = tpu.iota {dimensions = array<i32: 1>} : vector<128x128xi32>
    %49 = arith.cmpi sge, %48, %47 : vector<128x128xi32>
    %50 = vector.extract_strided_slice %43 {offsets = [0, 0], sizes = [1, 128], strides = [1, 1]} : vector<8x128xf32> to vector<1x128xf32>
    %51 = vector.shape_cast %50 : vector<1x128xf32> to vector<1x128xf32>
    %52 = vector.broadcast %51 : vector<1x128xf32> to vector<128x128xf32>
    %c0_i32 = arith.constant 0 : i32
    %53 = tpu.dynamic_rotate %52 by %c0_i32 dim 1 {stride = 1 : si32, stride_dimension = 0 : si32} : vector<128x128xf32>, i32 -> vector<128x128xf32>
    %cst_32 = arith.constant 0.000000e+00 : f32
    %54 = vector.broadcast %cst_32 : f32 to vector<128x128xf32>
    %55 = arith.select %49, %53, %54 : vector<128x128xi1>, vector<128x128xf32>
    %56 = arith.truncf %55 : vector<128x128xf32> to vector<128x128xbf16>
    %57 = vector.extract_strided_slice %45 {offsets = [0, 0, 0], sizes = [2, 1, 128], strides = [1, 1, 1]} : vector<2x8x128xf32> to vector<2x1x128xf32>
    %58 = vector.shape_cast %57 : vector<2x1x128xf32> to vector<2x128xf32>
    %59 = vector.extract_strided_slice %46 {offsets = [0, 0, 0], sizes = [2, 1, 128], strides = [1, 1, 1]} : vector<2x8x128xbf16> to vector<2x1x128xbf16>
    %60 = vector.shape_cast %59 : vector<2x1x128xbf16> to vector<2x128xbf16>
    %cst_33 = arith.constant dense<0.000000e+00> : vector<2x128xf32>
    %61 = tpu.matmul %60, %56, %cst_33 {dimension_numbers = #tpu.dot_dimension_numbers<[1], [0], [0], [1], [0, 0, 1, 1], [], []>} : vector<2x128xbf16>, vector<128x128xbf16>, vector<2x128xf32> -> vector<2x128xf32>
    %c0_i32_34 = arith.constant 0 : i32
    %62 = arith.addi %44, %c0_i32_34 : i32
    %63 = arith.index_cast %62 : i32 to index
    %64 = memref.load %arg11[%63] : memref<16xf32, #tpu.memory_space<smem>>
    %65 = vector.broadcast %64 : f32 to vector<2x128xf32>
    %66 = arith.mulf %58, %65 : vector<2x128xf32>
    %67 = arith.addf %61, %66 : vector<2x128xf32>
    %c0_35 = arith.constant 0 : index
    %c0_36 = arith.constant 0 : index
    %c0_37 = arith.constant 0 : index
    %68 = vector.load %arg12[%c0_35, %c0_36, %c0_37] : memref<2x8x128xf32, #tpu.memory_space<vmem>>, vector<2x1x128xf32>
    %69 = vector.shape_cast %68 : vector<2x1x128xf32> to vector<2x128xf32>
    %70 = vector.shape_cast %67 : vector<2x128xf32> to vector<2x1x128xf32>
    tpu.vector_store %arg12[%c0_35, %c0_36, %c0_37], %70 {strides = array<i32>} : memref<2x8x128xf32, #tpu.memory_space<vmem>>, vector<2x1x128xf32>,
    %71 = vector.extract_strided_slice %43 {offsets = [1, 0], sizes = [1, 128], strides = [1, 1]} : vector<8x128xf32> to vector<1x128xf32>
    %72 = vector.shape_cast %71 : vector<1x128xf32> to vector<1x128xf32>
    %73 = vector.broadcast %72 : vector<1x128xf32> to vector<128x128xf32>
    %c0_i32_38 = arith.constant 0 : i32
    %74 = tpu.dynamic_rotate %73 by %c0_i32_38 dim 1 {stride = 1 : si32, stride_dimension = 0 : si32} : vector<128x128xf32>, i32 -> vector<128x128xf32>
    %cst_39 = arith.constant 0.000000e+00 : f32
    %75 = vector.broadcast %cst_39 : f32 to vector<128x128xf32>
    %76 = arith.select %49, %74, %75 : vector<128x128xi1>, vector<128x128xf32>
    %77 = arith.truncf %76 : vector<128x128xf32> to vector<128x128xbf16>
    %78 = vector.extract_strided_slice %45 {offsets = [0, 1, 0], sizes = [2, 1, 128], strides = [1, 1, 1]} : vector<2x8x128xf32> to vector<2x1x128xf32>
    %79 = vector.shape_cast %78 : vector<2x1x128xf32> to vector<2x128xf32>
    %80 = vector.extract_strided_slice %46 {offsets = [0, 1, 0], sizes = [2, 1, 128], strides = [1, 1, 1]} : vector<2x8x128xbf16> to vector<2x1x128xbf16>
    %81 = vector.shape_cast %80 : vector<2x1x128xbf16> to vector<2x128xbf16>
    %cst_40 = arith.constant dense<0.000000e+00> : vector<2x128xf32>
    %82 = tpu.matmul %81, %77, %cst_40 {dimension_numbers = #tpu.dot_dimension_numbers<[1], [0], [0], [1], [0, 0, 1, 1], [], []>} : vector<2x128xbf16>, vector<128x128xbf16>, vector<2x128xf32> -> vector<2x128xf32>
    %c1_i32 = arith.constant 1 : i32
    %83 = arith.addi %44, %c1_i32 : i32
    %84 = arith.index_cast %83 : i32 to index
    %85 = memref.load %arg11[%84] : memref<16xf32, #tpu.memory_space<smem>>
    %86 = vector.broadcast %85 : f32 to vector<2x128xf32>
    %87 = arith.mulf %79, %86 : vector<2x128xf32>
    %88 = arith.addf %82, %87 : vector<2x128xf32>
    %c0_41 = arith.constant 0 : index
    %c1_42 = arith.constant 1 : index
    %c0_43 = arith.constant 0 : index
    %89 = vector.load %arg12[%c0_41, %c1_42, %c0_43] : memref<2x8x128xf32, #tpu.memory_space<vmem>>, vector<2x1x128xf32>
    %90 = vector.shape_cast %89 : vector<2x1x128xf32> to vector<2x128xf32>
    %91 = vector.shape_cast %88 : vector<2x128xf32> to vector<2x1x128xf32>
    tpu.vector_store %arg12[%c0_41, %c1_42, %c0_43], %91 {strides = array<i32>} : memref<2x8x128xf32, #tpu.memory_space<vmem>>, vector<2x1x128xf32>,
    %92 = vector.extract_strided_slice %43 {offsets = [2, 0], sizes = [1, 128], strides = [1, 1]} : vector<8x128xf32> to vector<1x128xf32>
    %93 = vector.shape_cast %92 : vector<1x128xf32> to vector<1x128xf32>
    %94 = vector.broadcast %93 : vector<1x128xf32> to vector<128x128xf32>
    %c0_i32_44 = arith.constant 0 : i32
    %95 = tpu.dynamic_rotate %94 by %c0_i32_44 dim 1 {stride = 1 : si32, stride_dimension = 0 : si32} : vector<128x128xf32>, i32 -> vector<128x128xf32>
    %cst_45 = arith.constant 0.000000e+00 : f32
    %96 = vector.broadcast %cst_45 : f32 to vector<128x128xf32>
    %97 = arith.select %49, %95, %96 : vector<128x128xi1>, vector<128x128xf32>
    %98 = arith.truncf %97 : vector<128x128xf32> to vector<128x128xbf16>
    %99 = vector.extract_strided_slice %45 {offsets = [0, 2, 0], sizes = [2, 1, 128], strides = [1, 1, 1]} : vector<2x8x128xf32> to vector<2x1x128xf32>
    %100 = vector.shape_cast %99 : vector<2x1x128xf32> to vector<2x128xf32>
    %101 = vector.extract_strided_slice %46 {offsets = [0, 2, 0], sizes = [2, 1, 128], strides = [1, 1, 1]} : vector<2x8x128xbf16> to vector<2x1x128xbf16>
    %102 = vector.shape_cast %101 : vector<2x1x128xbf16> to vector<2x128xbf16>
    %cst_46 = arith.constant dense<0.000000e+00> : vector<2x128xf32>
    %103 = tpu.matmul %102, %98, %cst_46 {dimension_numbers = #tpu.dot_dimension_numbers<[1], [0], [0], [1], [0, 0, 1, 1], [], []>} : vector<2x128xbf16>, vector<128x128xbf16>, vector<2x128xf32> -> vector<2x128xf32>
    %c2_i32 = arith.constant 2 : i32
    %104 = arith.addi %44, %c2_i32 : i32
    %105 = arith.index_cast %104 : i32 to index
    %106 = memref.load %arg11[%105] : memref<16xf32, #tpu.memory_space<smem>>
    %107 = vector.broadcast %106 : f32 to vector<2x128xf32>
    %108 = arith.mulf %100, %107 : vector<2x128xf32>
    %109 = arith.addf %103, %108 : vector<2x128xf32>
    %c0_47 = arith.constant 0 : index
    %c2 = arith.constant 2 : index
    %c0_48 = arith.constant 0 : index
    %110 = vector.load %arg12[%c0_47, %c2, %c0_48] : memref<2x8x128xf32, #tpu.memory_space<vmem>>, vector<2x1x128xf32>
    %111 = vector.shape_cast %110 : vector<2x1x128xf32> to vector<2x128xf32>
    %112 = vector.shape_cast %109 : vector<2x128xf32> to vector<2x1x128xf32>
    tpu.vector_store %arg12[%c0_47, %c2, %c0_48], %112 {strides = array<i32>} : memref<2x8x128xf32, #tpu.memory_space<vmem>>, vector<2x1x128xf32>,
    %113 = vector.extract_strided_slice %43 {offsets = [3, 0], sizes = [1, 128], strides = [1, 1]} : vector<8x128xf32> to vector<1x128xf32>
    %114 = vector.shape_cast %113 : vector<1x128xf32> to vector<1x128xf32>
    %115 = vector.broadcast %114 : vector<1x128xf32> to vector<128x128xf32>
    %c0_i32_49 = arith.constant 0 : i32
    %116 = tpu.dynamic_rotate %115 by %c0_i32_49 dim 1 {stride = 1 : si32, stride_dimension = 0 : si32} : vector<128x128xf32>, i32 -> vector<128x128xf32>
    %cst_50 = arith.constant 0.000000e+00 : f32
    %117 = vector.broadcast %cst_50 : f32 to vector<128x128xf32>
    %118 = arith.select %49, %116, %117 : vector<128x128xi1>, vector<128x128xf32>
    %119 = arith.truncf %118 : vector<128x128xf32> to vector<128x128xbf16>
    %120 = vector.extract_strided_slice %45 {offsets = [0, 3, 0], sizes = [2, 1, 128], strides = [1, 1, 1]} : vector<2x8x128xf32> to vector<2x1x128xf32>
    %121 = vector.shape_cast %120 : vector<2x1x128xf32> to vector<2x128xf32>
    %122 = vector.extract_strided_slice %46 {offsets = [0, 3, 0], sizes = [2, 1, 128], strides = [1, 1, 1]} : vector<2x8x128xbf16> to vector<2x1x128xbf16>
    %123 = vector.shape_cast %122 : vector<2x1x128xbf16> to vector<2x128xbf16>
    %cst_51 = arith.constant dense<0.000000e+00> : vector<2x128xf32>
    %124 = tpu.matmul %123, %119, %cst_51 {dimension_numbers = #tpu.dot_dimension_numbers<[1], [0], [0], [1], [0, 0, 1, 1], [], []>} : vector<2x128xbf16>, vector<128x128xbf16>, vector<2x128xf32> -> vector<2x128xf32>
    %c3_i32 = arith.constant 3 : i32
    %125 = arith.addi %44, %c3_i32 : i32
    %126 = arith.index_cast %125 : i32 to index
    %127 = memref.load %arg11[%126] : memref<16xf32, #tpu.memory_space<smem>>
    %128 = vector.broadcast %127 : f32 to vector<2x128xf32>
    %129 = arith.mulf %121, %128 : vector<2x128xf32>
    %130 = arith.addf %124, %129 : vector<2x128xf32>
    %c0_52 = arith.constant 0 : index
    %c3 = arith.constant 3 : index
    %c0_53 = arith.constant 0 : index
    %131 = vector.load %arg12[%c0_52, %c3, %c0_53] : memref<2x8x128xf32, #tpu.memory_space<vmem>>, vector<2x1x128xf32>
    %132 = vector.shape_cast %131 : vector<2x1x128xf32> to vector<2x128xf32>
    %133 = vector.shape_cast %130 : vector<2x128xf32> to vector<2x1x128xf32>
    tpu.vector_store %arg12[%c0_52, %c3, %c0_53], %133 {strides = array<i32>} : memref<2x8x128xf32, #tpu.memory_space<vmem>>, vector<2x1x128xf32>,
    %134 = vector.extract_strided_slice %43 {offsets = [4, 0], sizes = [1, 128], strides = [1, 1]} : vector<8x128xf32> to vector<1x128xf32>
    %135 = vector.shape_cast %134 : vector<1x128xf32> to vector<1x128xf32>
    %136 = vector.broadcast %135 : vector<1x128xf32> to vector<128x128xf32>
    %c0_i32_54 = arith.constant 0 : i32
    %137 = tpu.dynamic_rotate %136 by %c0_i32_54 dim 1 {stride = 1 : si32, stride_dimension = 0 : si32} : vector<128x128xf32>, i32 -> vector<128x128xf32>
    %cst_55 = arith.constant 0.000000e+00 : f32
    %138 = vector.broadcast %cst_55 : f32 to vector<128x128xf32>
    %139 = arith.select %49, %137, %138 : vector<128x128xi1>, vector<128x128xf32>
    %140 = arith.truncf %139 : vector<128x128xf32> to vector<128x128xbf16>
    %141 = vector.extract_strided_slice %45 {offsets = [0, 4, 0], sizes = [2, 1, 128], strides = [1, 1, 1]} : vector<2x8x128xf32> to vector<2x1x128xf32>
    %142 = vector.shape_cast %141 : vector<2x1x128xf32> to vector<2x128xf32>
    %143 = vector.extract_strided_slice %46 {offsets = [0, 4, 0], sizes = [2, 1, 128], strides = [1, 1, 1]} : vector<2x8x128xbf16> to vector<2x1x128xbf16>
    %144 = vector.shape_cast %143 : vector<2x1x128xbf16> to vector<2x128xbf16>
    %cst_56 = arith.constant dense<0.000000e+00> : vector<2x128xf32>
    %145 = tpu.matmul %144, %140, %cst_56 {dimension_numbers = #tpu.dot_dimension_numbers<[1], [0], [0], [1], [0, 0, 1, 1], [], []>} : vector<2x128xbf16>, vector<128x128xbf16>, vector<2x128xf32> -> vector<2x128xf32>
    %c4_i32 = arith.constant 4 : i32
    %146 = arith.addi %44, %c4_i32 : i32
    %147 = arith.index_cast %146 : i32 to index
    %148 = memref.load %arg11[%147] : memref<16xf32, #tpu.memory_space<smem>>
    %149 = vector.broadcast %148 : f32 to vector<2x128xf32>
    %150 = arith.mulf %142, %149 : vector<2x128xf32>
    %151 = arith.addf %145, %150 : vector<2x128xf32>
    %c0_57 = arith.constant 0 : index
    %c4 = arith.constant 4 : index
    %c0_58 = arith.constant 0 : index
    %152 = vector.load %arg12[%c0_57, %c4, %c0_58] : memref<2x8x128xf32, #tpu.memory_space<vmem>>, vector<2x1x128xf32>
    %153 = vector.shape_cast %152 : vector<2x1x128xf32> to vector<2x128xf32>
    %154 = vector.shape_cast %151 : vector<2x128xf32> to vector<2x1x128xf32>
    tpu.vector_store %arg12[%c0_57, %c4, %c0_58], %154 {strides = array<i32>} : memref<2x8x128xf32, #tpu.memory_space<vmem>>, vector<2x1x128xf32>,
    %155 = vector.extract_strided_slice %43 {offsets = [5, 0], sizes = [1, 128], strides = [1, 1]} : vector<8x128xf32> to vector<1x128xf32>
    %156 = vector.shape_cast %155 : vector<1x128xf32> to vector<1x128xf32>
    %157 = vector.broadcast %156 : vector<1x128xf32> to vector<128x128xf32>
    %c0_i32_59 = arith.constant 0 : i32
    %158 = tpu.dynamic_rotate %157 by %c0_i32_59 dim 1 {stride = 1 : si32, stride_dimension = 0 : si32} : vector<128x128xf32>, i32 -> vector<128x128xf32>
    %cst_60 = arith.constant 0.000000e+00 : f32
    %159 = vector.broadcast %cst_60 : f32 to vector<128x128xf32>
    %160 = arith.select %49, %158, %159 : vector<128x128xi1>, vector<128x128xf32>
    %161 = arith.truncf %160 : vector<128x128xf32> to vector<128x128xbf16>
    %162 = vector.extract_strided_slice %45 {offsets = [0, 5, 0], sizes = [2, 1, 128], strides = [1, 1, 1]} : vector<2x8x128xf32> to vector<2x1x128xf32>
    %163 = vector.shape_cast %162 : vector<2x1x128xf32> to vector<2x128xf32>
    %164 = vector.extract_strided_slice %46 {offsets = [0, 5, 0], sizes = [2, 1, 128], strides = [1, 1, 1]} : vector<2x8x128xbf16> to vector<2x1x128xbf16>
    %165 = vector.shape_cast %164 : vector<2x1x128xbf16> to vector<2x128xbf16>
    %cst_61 = arith.constant dense<0.000000e+00> : vector<2x128xf32>
    %166 = tpu.matmul %165, %161, %cst_61 {dimension_numbers = #tpu.dot_dimension_numbers<[1], [0], [0], [1], [0, 0, 1, 1], [], []>} : vector<2x128xbf16>, vector<128x128xbf16>, vector<2x128xf32> -> vector<2x128xf32>
    %c5_i32 = arith.constant 5 : i32
    %167 = arith.addi %44, %c5_i32 : i32
    %168 = arith.index_cast %167 : i32 to index
    %169 = memref.load %arg11[%168] : memref<16xf32, #tpu.memory_space<smem>>
    %170 = vector.broadcast %169 : f32 to vector<2x128xf32>
    %171 = arith.mulf %163, %170 : vector<2x128xf32>
    %172 = arith.addf %166, %171 : vector<2x128xf32>
    %c0_62 = arith.constant 0 : index
    %c5 = arith.constant 5 : index
    %c0_63 = arith.constant 0 : index
    %173 = vector.load %arg12[%c0_62, %c5, %c0_63] : memref<2x8x128xf32, #tpu.memory_space<vmem>>, vector<2x1x128xf32>
    %174 = vector.shape_cast %173 : vector<2x1x128xf32> to vector<2x128xf32>
    %175 = vector.shape_cast %172 : vector<2x128xf32> to vector<2x1x128xf32>
    tpu.vector_store %arg12[%c0_62, %c5, %c0_63], %175 {strides = array<i32>} : memref<2x8x128xf32, #tpu.memory_space<vmem>>, vector<2x1x128xf32>,
    %176 = vector.extract_strided_slice %43 {offsets = [6, 0], sizes = [1, 128], strides = [1, 1]} : vector<8x128xf32> to vector<1x128xf32>
    %177 = vector.shape_cast %176 : vector<1x128xf32> to vector<1x128xf32>
    %178 = vector.broadcast %177 : vector<1x128xf32> to vector<128x128xf32>
    %c0_i32_64 = arith.constant 0 : i32
    %179 = tpu.dynamic_rotate %178 by %c0_i32_64 dim 1 {stride = 1 : si32, stride_dimension = 0 : si32} : vector<128x128xf32>, i32 -> vector<128x128xf32>
    %cst_65 = arith.constant 0.000000e+00 : f32
    %180 = vector.broadcast %cst_65 : f32 to vector<128x128xf32>
    %181 = arith.select %49, %179, %180 : vector<128x128xi1>, vector<128x128xf32>
    %182 = arith.truncf %181 : vector<128x128xf32> to vector<128x128xbf16>
    %183 = vector.extract_strided_slice %45 {offsets = [0, 6, 0], sizes = [2, 1, 128], strides = [1, 1, 1]} : vector<2x8x128xf32> to vector<2x1x128xf32>
    %184 = vector.shape_cast %183 : vector<2x1x128xf32> to vector<2x128xf32>
    %185 = vector.extract_strided_slice %46 {offsets = [0, 6, 0], sizes = [2, 1, 128], strides = [1, 1, 1]} : vector<2x8x128xbf16> to vector<2x1x128xbf16>
    %186 = vector.shape_cast %185 : vector<2x1x128xbf16> to vector<2x128xbf16>
    %cst_66 = arith.constant dense<0.000000e+00> : vector<2x128xf32>
    %187 = tpu.matmul %186, %182, %cst_66 {dimension_numbers = #tpu.dot_dimension_numbers<[1], [0], [0], [1], [0, 0, 1, 1], [], []>} : vector<2x128xbf16>, vector<128x128xbf16>, vector<2x128xf32> -> vector<2x128xf32>
    %c6_i32 = arith.constant 6 : i32
    %188 = arith.addi %44, %c6_i32 : i32
    %189 = arith.index_cast %188 : i32 to index
    %190 = memref.load %arg11[%189] : memref<16xf32, #tpu.memory_space<smem>>
    %191 = vector.broadcast %190 : f32 to vector<2x128xf32>
    %192 = arith.mulf %184, %191 : vector<2x128xf32>
    %193 = arith.addf %187, %192 : vector<2x128xf32>
    %c0_67 = arith.constant 0 : index
    %c6 = arith.constant 6 : index
    %c0_68 = arith.constant 0 : index
    %194 = vector.load %arg12[%c0_67, %c6, %c0_68] : memref<2x8x128xf32, #tpu.memory_space<vmem>>, vector<2x1x128xf32>
    %195 = vector.shape_cast %194 : vector<2x1x128xf32> to vector<2x128xf32>
    %196 = vector.shape_cast %193 : vector<2x128xf32> to vector<2x1x128xf32>
    tpu.vector_store %arg12[%c0_67, %c6, %c0_68], %196 {strides = array<i32>} : memref<2x8x128xf32, #tpu.memory_space<vmem>>, vector<2x1x128xf32>,
    %197 = vector.extract_strided_slice %43 {offsets = [7, 0], sizes = [1, 128], strides = [1, 1]} : vector<8x128xf32> to vector<1x128xf32>
    %198 = vector.shape_cast %197 : vector<1x128xf32> to vector<1x128xf32>
    %199 = vector.broadcast %198 : vector<1x128xf32> to vector<128x128xf32>
    %c0_i32_69 = arith.constant 0 : i32
    %200 = tpu.dynamic_rotate %199 by %c0_i32_69 dim 1 {stride = 1 : si32, stride_dimension = 0 : si32} : vector<128x128xf32>, i32 -> vector<128x128xf32>
    %cst_70 = arith.constant 0.000000e+00 : f32
    %201 = vector.broadcast %cst_70 : f32 to vector<128x128xf32>
    %202 = arith.select %49, %200, %201 : vector<128x128xi1>, vector<128x128xf32>
    %203 = arith.truncf %202 : vector<128x128xf32> to vector<128x128xbf16>
    %204 = vector.extract_strided_slice %45 {offsets = [0, 7, 0], sizes = [2, 1, 128], strides = [1, 1, 1]} : vector<2x8x128xf32> to vector<2x1x128xf32>
    %205 = vector.shape_cast %204 : vector<2x1x128xf32> to vector<2x128xf32>
    %206 = vector.extract_strided_slice %46 {offsets = [0, 7, 0], sizes = [2, 1, 128], strides = [1, 1, 1]} : vector<2x8x128xbf16> to vector<2x1x128xbf16>
    %207 = vector.shape_cast %206 : vector<2x1x128xbf16> to vector<2x128xbf16>
    %cst_71 = arith.constant dense<0.000000e+00> : vector<2x128xf32>
    %208 = tpu.matmul %207, %203, %cst_71 {dimension_numbers = #tpu.dot_dimension_numbers<[1], [0], [0], [1], [0, 0, 1, 1], [], []>} : vector<2x128xbf16>, vector<128x128xbf16>, vector<2x128xf32> -> vector<2x128xf32>
    %c7_i32 = arith.constant 7 : i32
    %209 = arith.addi %44, %c7_i32 : i32
    %210 = arith.index_cast %209 : i32 to index
    %211 = memref.load %arg11[%210] : memref<16xf32, #tpu.memory_space<smem>>
    %212 = vector.broadcast %211 : f32 to vector<2x128xf32>
    %213 = arith.mulf %205, %212 : vector<2x128xf32>
    %214 = arith.addf %208, %213 : vector<2x128xf32>
    %c0_72 = arith.constant 0 : index
    %c7 = arith.constant 7 : index
    %c0_73 = arith.constant 0 : index
    %215 = vector.load %arg12[%c0_72, %c7, %c0_73] : memref<2x8x128xf32, #tpu.memory_space<vmem>>, vector<2x1x128xf32>
    %216 = vector.shape_cast %215 : vector<2x1x128xf32> to vector<2x128xf32>
    %217 = vector.shape_cast %214 : vector<2x128xf32> to vector<2x1x128xf32>
    tpu.vector_store %arg12[%c0_72, %c7, %c0_73], %217 {strides = array<i32>} : memref<2x8x128xf32, #tpu.memory_space<vmem>>, vector<2x1x128xf32>,
    return
  }
  func.func @transform_0(%arg0: i32) -> (i32, i32) {
    %c0_i32 = arith.constant 0 : i32
    %c0_i32_0 = arith.constant 0 : i32
    %c0_i32_1 = arith.constant 0 : i32
    return %c0_i32, %c0_i32_0 : i32, i32
  }
  func.func @transform_1(%arg0: i32) -> (i32, i32) {
    %c0_i32 = arith.constant 0 : i32
    %c0_i32_0 = arith.constant 0 : i32
    %c0_i32_1 = arith.constant 0 : i32
    return %c0_i32, %c0_i32_0 : i32, i32
  }
  func.func @transform_2(%arg0: i32) -> (i32, i32) {
    %c0_i32 = arith.constant 0 : i32
    %c0_i32_0 = arith.constant 0 : i32
    %c0_i32_1 = arith.constant 0 : i32
    return %c0_i32, %c0_i32_0 : i32, i32
  }
  func.func @transform_3(%arg0: i32) -> (i32, i32) {
    %c0_i32 = arith.constant 0 : i32
    %c0_i32_0 = arith.constant 0 : i32
    %c0_i32_1 = arith.constant 0 : i32
    return %c0_i32, %c0_i32_0 : i32, i32
  }
  func.func @transform_4(%arg0: i32) -> (i32, i32, i32) {
    %c0_i32 = arith.constant 0 : i32
    %c0_i32_0 = arith.constant 0 : i32
    %c0_i32_1 = arith.constant 0 : i32
    %c0_i32_2 = arith.constant 0 : i32
    return %c0_i32, %c0_i32_0, %c0_i32_1 : i32, i32, i32
  }
  func.func @transform_5(%arg0: i32) -> (i32, i32, i32) {
    %c0_i32 = arith.constant 0 : i32
    %c0_i32_0 = arith.constant 0 : i32
    %c0_i32_1 = arith.constant 0 : i32
    %c0_i32_2 = arith.constant 0 : i32
    return %c0_i32, %c0_i32_0, %c0_i32_1 : i32, i32, i32
  }
  func.func @transform_6(%arg0: i32) -> (i32, i32) {
    %c0_i32 = arith.constant 0 : i32
    %c0_i32_0 = arith.constant 0 : i32
    return %arg0, %c0_i32 : i32, i32
  }
  func.func @transform_7(%arg0: i32) -> (i32, i32) {
    %c0_i32 = arith.constant 0 : i32
    %c0_i32_0 = arith.constant 0 : i32
    %c0_i32_1 = arith.constant 0 : i32
    return %c0_i32, %c0_i32_0 : i32, i32
  }
  func.func @transform_8(%arg0: i32) -> (i32, i32) {
    %c0_i32 = arith.constant 0 : i32
    %c0_i32_0 = arith.constant 0 : i32
    return %arg0, %c0_i32 : i32, i32
  }
  func.func @transform_9(%arg0: i32) -> (i32, i32, i32) {
    %c0_i32 = arith.constant 0 : i32
    %c0_i32_0 = arith.constant 0 : i32
    %c0_i32_1 = arith.constant 0 : i32
    return %c0_i32, %arg0, %c0_i32_0 : i32, i32, i32
  }
  func.func @transform_10(%arg0: i32) -> i32 {
    %c0_i32 = arith.constant 0 : i32
    %c0_i32_0 = arith.constant 0 : i32
    return %c0_i32 : i32
  }
  func.func @transform_11(%arg0: i32) -> (i32, i32, i32) {
    %c0_i32 = arith.constant 0 : i32
    %c0_i32_0 = arith.constant 0 : i32
    %c0_i32_1 = arith.constant 0 : i32
    return %c0_i32, %arg0, %c0_i32_0 : i32, i32, i32
  }
}

</mosaic_0001>

<llo_original>
// kernel: tpu_custom_call.1
$region0: #{tpu_custom_call.1}
  #allocation0 [shape = 'u32[]', space=smem, size = 0x4, offset = 0x4, fixed_abs, tag = 'smem constant byte address 0x4 - core index']
  #allocation1 [shape = 'u32[72,128]{1,0:T(1,128)}', space=vmem, size = 0x9000, scoped, tag = 'internal scratch']
  %s0 = inlined_call_operand.vmem [shape: f32[3,128], index: 0, kind: input, shape index: {}]
  %s1 = inlined_call_operand.vmem [shape: f32[1,128], index: 1, kind: input, shape index: {}]
  %s2 = inlined_call_operand.vmem [shape: f32[16,3], index: 2, kind: input, shape index: {}]
  %s3 = inlined_call_operand.vmem [shape: f32[16,1], index: 3, kind: input, shape index: {}]
  %s4 = inlined_call_operand.vmem [shape: f32[2,16,16], index: 4, kind: input, shape index: {}]
  %s5 = inlined_call_operand.vmem [shape: f32[2,16,1], index: 5, kind: input, shape index: {}]
  %s6 = inlined_call_operand.vmem [shape: f32[16,16], index: 6, kind: input, shape index: {}]
  %s7 = inlined_call_operand.vmem [shape: f32[16,1], index: 7, kind: input, shape index: {}]
  %s8 = inlined_call_operand.vmem [shape: f32[16,1], index: 8, kind: input, shape index: {}]
  %s9 = inlined_call_operand.vmem [shape: f32[2,16,128], index: 9, kind: input, shape index: {}]
  %s10 = inlined_call_operand.vmem [shape: f32[16], index: 10, kind: input, shape index: {}]
  %s11 = inlined_call_operand.hbm [shape: f32[2,16,128], index: 11, kind: output, shape index: {}]
  %s12 = sld [smem:[#allocation0]]
  $region119: #{tpu_custom_call.1} parent=0
    _
  %s14 = ssub.s32 1, %s12
  %s15 = scalar_select 0, %s14, %s12
  $region1: #{tpu_custom_call.1} parent=0
    #allocation2 [shape = 'u8[16384]{0}', space=vmem, size = 0x4000, scoped, tag = 'input window, operand 9']
    #allocation3 [shape = 'u8[512]{0}', space=smem, size = 0x200, scoped, tag = 'input window, operand 10, single buffered']
    #allocation4 [shape = 's32[2]{0}', space=sflag, size = 0x8, scoped, tag = 'scoped memory for tpu_custom_call.1']
    #allocation5 [shape = 's32[2]{0}', space=sflag, size = 0x8, scoped, tag = 'scoped memory for tpu_custom_call.1']
    #allocation6 [shape = 'u8[16384]{0}', space=vmem, size = 0x4000, scoped, tag = 'output window, operand 0']
    %16 = vsyncpa [#allocation5], 0
    %17 = vsyncpa [#allocation4], 0
    %s18 = scalar_lea.sflag [#allocation4], 1
    %19 = vsyncpa %s18, 0
    loop: start=0, step=1, limit=4
    $region2: #{tpu_custom_call.1} parent=1 // loop_pre_header
      _
    $region3: #{tpu_custom_call.1} parent=1 // loop_header
      %s21 = sphi 0, %s25
      %p22 = scmp.ge.s32.totalorder %s21, 4
      %s29 = sphi 0, %s29
      %s31 = sphi 0, %s29
      %s32 = sphi 0, %s31
      %s46 = sphi 0, %s32
      %s50 = sphi 0, %s50
      %s52 = sphi 0, %s50
      %s53 = sphi 0, %s52
      %s67 = sphi 0, %s53
      %s71 = sphi 0, %s71
      %s73 = sphi 0, %s71
      %s74 = sphi 0, %s73
      %s88 = sphi 0, %s74
      %s92 = sphi 0, %s92
      %s94 = sphi 0, %s92
      %s95 = sphi 0, %s94
      %s109 = sphi 0, %s95
      %s113 = sphi 0, %s113
      %s115 = sphi 0, %s113
      %s116 = sphi 0, %s115
      %s130 = sphi 0, %s116
      %s134 = sphi 0, %s134
      %s136 = sphi 0, %s134
      %s137 = sphi 0, %s136
      %s151 = sphi 0, %s137
      %s157 = sphi 0, %s159
      %s160 = sphi 0, %s157
      %s161 = sphi 0, %s160
      %s177 = sphi 0, %s161
      %s181 = sphi 0, %s181
      %s183 = sphi 0, %s181
      %s184 = sphi 0, %s183
      %s198 = sphi 0, %s184
      %s204 = sphi 0, %s206
      %s207 = sphi 0, %s204
      %s208 = sphi 0, %s207
      %s224 = sphi 0, %s208
      %s230 = sphi 0, %s232
      %s233 = sphi 0, %s230
      %s234 = sphi 0, %s233
      %s250 = sphi 0, %s234
      %s254 = sphi 0, %s254
      %s256 = sphi 0, %s254
      %s257 = sphi 0, %s256
      %s271 = sphi 0, %s257
      %s277 = sphi 0, %s279
      %s280 = sphi 0, %s277
      %s281 = sphi 0, %s280
      %s297 = sphi 0, %s281
    $region4: #{tpu_custom_call.1} parent=1 // loop_header_branch
      %24 = sbr.rel (%p22) target = $region8
    $region5: #{tpu_custom_call.1} parent=1 // loop_body
      %s26 = ssub.s32 %s21, 1
      %s27 = ssub.s32 %s21, 2
      %s28 = sadd.s32 %s21, 1
      %s30 = sadd.s32 %s29, 1
      %p33 = scmp.eq.s32.totalorder %s21, 1
      %p34 = scmp.ne.s32.totalorder %s29, %s31
      %p35 = scmp.eq.s32.totalorder %s21, 0
      %p36 = por %p34, %p35
      %p37 = scmp.ne.s32.totalorder %s29, %s31
      %p38 = scmp.eq.s32.totalorder %s26, 1
      %p39 = por %p37, %p38
      %p40 = scmp.ne.s32.totalorder %s31, %s32
      %p41 = scmp.eq.s32.totalorder %s26, 0
      %p42 = por %p40, %p41
      %p43 = scmp.ne.s32.totalorder %s31, %s32
      %p44 = scmp.eq.s32.totalorder %s27, 1
      %p45 = por %p43, %p44
      %p47 = scmp.ne.s32.totalorder %s32, %s46
      %p48 = scmp.eq.s32.totalorder %s27, 0
      %p49 = por %p47, %p48
      %s51 = sadd.s32 %s50, 1
      %p54 = scmp.eq.s32.totalorder %s21, 1
      %p55 = scmp.ne.s32.totalorder %s50, %s52
      %p56 = scmp.eq.s32.totalorder %s21, 0
      %p57 = por %p55, %p56
      %p58 = scmp.ne.s32.totalorder %s50, %s52
      %p59 = scmp.eq.s32.totalorder %s26, 1
      %p60 = por %p58, %p59
      %p61 = scmp.ne.s32.totalorder %s52, %s53
      %p62 = scmp.eq.s32.totalorder %s26, 0
      %p63 = por %p61, %p62
      %p64 = scmp.ne.s32.totalorder %s52, %s53
      %p65 = scmp.eq.s32.totalorder %s27, 1
      %p66 = por %p64, %p65
      %p68 = scmp.ne.s32.totalorder %s53, %s67
      %p69 = scmp.eq.s32.totalorder %s27, 0
      %p70 = por %p68, %p69
      %s72 = sadd.s32 %s71, 1
      %p75 = scmp.eq.s32.totalorder %s21, 1
      %p76 = scmp.ne.s32.totalorder %s71, %s73
      %p77 = scmp.eq.s32.totalorder %s21, 0
      %p78 = por %p76, %p77
      %p79 = scmp.ne.s32.totalorder %s71, %s73
      %p80 = scmp.eq.s32.totalorder %s26, 1
      %p81 = por %p79, %p80
      %p82 = scmp.ne.s32.totalorder %s73, %s74
      %p83 = scmp.eq.s32.totalorder %s26, 0
      %p84 = por %p82, %p83
      %p85 = scmp.ne.s32.totalorder %s73, %s74
      %p86 = scmp.eq.s32.totalorder %s27, 1
      %p87 = por %p85, %p86
      %p89 = scmp.ne.s32.totalorder %s74, %s88
      %p90 = scmp.eq.s32.totalorder %s27, 0
      %p91 = por %p89, %p90
      %s93 = sadd.s32 %s92, 1
      %p96 = scmp.eq.s32.totalorder %s21, 1
      %p97 = scmp.ne.s32.totalorder %s92, %s94
      %p98 = scmp.eq.s32.totalorder %s21, 0
      %p99 = por %p97, %p98
      %p100 = scmp.ne.s32.totalorder %s92, %s94
      %p101 = scmp.eq.s32.totalorder %s26, 1
      %p102 = por %p100, %p101
      %p103 = scmp.ne.s32.totalorder %s94, %s95
      %p104 = scmp.eq.s32.totalorder %s26, 0
      %p105 = por %p103, %p104
      %p106 = scmp.ne.s32.totalorder %s94, %s95
      %p107 = scmp.eq.s32.totalorder %s27, 1
      %p108 = por %p106, %p107
      %p110 = scmp.ne.s32.totalorder %s95, %s109
      %p111 = scmp.eq.s32.totalorder %s27, 0
      %p112 = por %p110, %p111
      %s114 = sadd.s32 %s113, 1
      %p117 = scmp.eq.s32.totalorder %s21, 1
      %p118 = scmp.ne.s32.totalorder %s113, %s115
      %p119 = scmp.eq.s32.totalorder %s21, 0
      %p120 = por %p118, %p119
      %p121 = scmp.ne.s32.totalorder %s113, %s115
      %p122 = scmp.eq.s32.totalorder %s26, 1
      %p123 = por %p121, %p122
      %p124 = scmp.ne.s32.totalorder %s115, %s116
      %p125 = scmp.eq.s32.totalorder %s26, 0
      %p126 = por %p124, %p125
      %p127 = scmp.ne.s32.totalorder %s115, %s116
      %p128 = scmp.eq.s32.totalorder %s27, 1
      %p129 = por %p127, %p128
      %p131 = scmp.ne.s32.totalorder %s116, %s130
      %p132 = scmp.eq.s32.totalorder %s27, 0
      %p133 = por %p131, %p132
      %s135 = sadd.s32 %s134, 1
      %p138 = scmp.eq.s32.totalorder %s21, 1
      %p139 = scmp.ne.s32.totalorder %s134, %s136
      %p140 = scmp.eq.s32.totalorder %s21, 0
      %p141 = por %p139, %p140
      %p142 = scmp.ne.s32.totalorder %s134, %s136
      %p143 = scmp.eq.s32.totalorder %s26, 1
      %p144 = por %p142, %p143
      %p145 = scmp.ne.s32.totalorder %s136, %s137
      %p146 = scmp.eq.s32.totalorder %s26, 0
      %p147 = por %p145, %p146
      %p148 = scmp.ne.s32.totalorder %s136, %s137
      %p149 = scmp.eq.s32.totalorder %s27, 1
      %p150 = por %p148, %p149
      %p152 = scmp.ne.s32.totalorder %s137, %s151
      %p153 = scmp.eq.s32.totalorder %s27, 0
      %p154 = por %p152, %p153
      %s155 = ssub.s32 %s21, %s28
      %p156 = scmp.eq.s32.totalorder %s155, 0
      %s158 = sadd.s32 %s157, 1
      %s159 = scalar_select %p156, %s157, %s158
      %p162 = pneg %p156
      %p163 = scmp.eq.s32.totalorder %s21, 1
      %p164 = por %p162, %p163
      %p165 = scmp.ne.s32.totalorder %s157, %s160
      %p166 = scmp.eq.s32.totalorder %s21, 0
      %p167 = por %p165, %p166
      %p168 = scmp.ne.s32.totalorder %s157, %s160
      %p169 = scmp.eq.s32.totalorder %s26, 1
      %p170 = por %p168, %p169
      %p171 = scmp.ne.s32.totalorder %s160, %s161
      %p172 = scmp.eq.s32.totalorder %s26, 0
      %p173 = por %p171, %p172
      %p174 = scmp.ne.s32.totalorder %s160, %s161
      %p175 = scmp.eq.s32.totalorder %s27, 1
      %p176 = por %p174, %p175
      %p178 = scmp.ne.s32.totalorder %s161, %s177
      %p179 = scmp.eq.s32.totalorder %s27, 0
      %p180 = por %p178, %p179
      %s182 = sadd.s32 %s181, 1
      %p185 = scmp.eq.s32.totalorder %s21, 1
      %p186 = scmp.ne.s32.totalorder %s181, %s183
      %p187 = scmp.eq.s32.totalorder %s21, 0
      %p188 = por %p186, %p187
      %p189 = scmp.ne.s32.totalorder %s181, %s183
      %p190 = scmp.eq.s32.totalorder %s26, 1
      %p191 = por %p189, %p190
      %p192 = scmp.ne.s32.totalorder %s183, %s184
      %p193 = scmp.eq.s32.totalorder %s26, 0
      %p194 = por %p192, %p193
      %p195 = scmp.ne.s32.totalorder %s183, %s184
      %p196 = scmp.eq.s32.totalorder %s27, 1
      %p197 = por %p195, %p196
      %p199 = scmp.ne.s32.totalorder %s184, %s198
      %p200 = scmp.eq.s32.totalorder %s27, 0
      %p201 = por %p199, %p200
      %s202 = ssub.s32 %s21, %s28
      %p203 = scmp.eq.s32.totalorder %s202, 0
      %s205 = sadd.s32 %s204, 1
      %s206 = scalar_select %p203, %s204, %s205
      %p209 = pneg %p203
      %p210 = scmp.eq.s32.totalorder %s21, 1
      %p211 = por %p209, %p210
      %p212 = scmp.ne.s32.totalorder %s204, %s207
      %p213 = scmp.eq.s32.totalorder %s21, 0
      %p214 = por %p212, %p213
      %p215 = scmp.ne.s32.totalorder %s204, %s207
      %p216 = scmp.eq.s32.totalorder %s26, 1
      %p217 = por %p215, %p216
      %p218 = scmp.ne.s32.totalorder %s207, %s208
      %p219 = scmp.eq.s32.totalorder %s26, 0
      %p220 = por %p218, %p219
      %p221 = scmp.ne.s32.totalorder %s207, %s208
      %p222 = scmp.eq.s32.totalorder %s27, 1
      %p223 = por %p221, %p222
      %p225 = scmp.ne.s32.totalorder %s208, %s224
      %p226 = scmp.eq.s32.totalorder %s27, 0
      %p227 = por %p225, %p226
      %s228 = ssub.s32 %s21, %s28
      %p229 = scmp.eq.s32.totalorder %s228, 0
      %s231 = sadd.s32 %s230, 1
      %s232 = scalar_select %p229, %s230, %s231
      %p235 = pneg %p229
      %p236 = scmp.eq.s32.totalorder %s21, 1
      %p237 = por %p235, %p236
      %p238 = scmp.ne.s32.totalorder %s230, %s233
      %p239 = scmp.eq.s32.totalorder %s21, 0
      %p240 = por %p238, %p239
      %p241 = scmp.ne.s32.totalorder %s230, %s233
      %p242 = scmp.eq.s32.totalorder %s26, 1
      %p243 = por %p241, %p242
      %p244 = scmp.ne.s32.totalorder %s233, %s234
      %p245 = scmp.eq.s32.totalorder %s26, 0
      %p246 = por %p244, %p245
      %p247 = scmp.ne.s32.totalorder %s233, %s234
      %p248 = scmp.eq.s32.totalorder %s27, 1
      %p249 = por %p247, %p248
      %p251 = scmp.ne.s32.totalorder %s234, %s250
      %p252 = scmp.eq.s32.totalorder %s27, 0
      %p253 = por %p251, %p252
      %s255 = sadd.s32 %s254, 1
      %p258 = scmp.eq.s32.totalorder %s21, 1
      %p259 = scmp.ne.s32.totalorder %s254, %s256
      %p260 = scmp.eq.s32.totalorder %s21, 0
      %p261 = por %p259, %p260
      %p262 = scmp.ne.s32.totalorder %s254, %s256
      %p263 = scmp.eq.s32.totalorder %s26, 1
      %p264 = por %p262, %p263
      %p265 = scmp.ne.s32.totalorder %s256, %s257
      %p266 = scmp.eq.s32.totalorder %s26, 0
      %p267 = por %p265, %p266
      %p268 = scmp.ne.s32.totalorder %s256, %s257
      %p269 = scmp.eq.s32.totalorder %s27, 1
      %p270 = por %p268, %p269
      %p272 = scmp.ne.s32.totalorder %s257, %s271
      %p273 = scmp.eq.s32.totalorder %s27, 0
      %p274 = por %p272, %p273
      %s275 = ssub.s32 %s21, %s28
      %p276 = scmp.eq.s32.totalorder %s275, 0
      %s278 = sadd.s32 %s277, 1
      %s279 = scalar_select %p276, %s277, %s278
      %p282 = pneg %p276
      %p283 = scmp.eq.s32.totalorder %s21, 1
      %p284 = por %p282, %p283
      %p285 = scmp.ne.s32.totalorder %s277, %s280
      %p286 = scmp.eq.s32.totalorder %s21, 0
      %p287 = por %p285, %p286
      %p288 = scmp.ne.s32.totalorder %s277, %s280
      %p289 = scmp.eq.s32.totalorder %s26, 1
      %p290 = por %p288, %p289
      %p291 = scmp.ne.s32.totalorder %s280, %s281
      %p292 = scmp.eq.s32.totalorder %s26, 0
      %p293 = por %p291, %p292
      %p294 = scmp.ne.s32.totalorder %s280, %s281
      %p295 = scmp.eq.s32.totalorder %s27, 1
      %p296 = por %p294, %p295
      %p298 = scmp.ne.s32.totalorder %s281, %s297
      %p299 = scmp.eq.s32.totalorder %s27, 0
      %p300 = por %p298, %p299
      %p301 = scmp.le.s32.totalorder 1, %s21
      %p302 = scmp.lt.s32.totalorder %s21, 3
      %p303 = pnand %p301, %p302
      %p304 = pneg %p303
      // Predicated region
      $region9: #{tpu_custom_call.1} parent=5 // pred_check
        _
      $region10: #{tpu_custom_call.1} parent=5 // pred_check_branch
        %306 = sbr.rel (%p303) target = $region12
      $region11: #{tpu_custom_call.1} parent=5 // pred_region
        %s307 = ssub.s32 %s21, 1
        // Predicated region
        $region13: #{tpu_custom_call.1} parent=11 // pred_check
          %p308 = pneg %p42
        $region14: #{tpu_custom_call.1} parent=11 // pred_check_branch
          %310 = sbr.rel (%p308) target = $region16
        $region15: #{tpu_custom_call.1} parent=11 // pred_region
          _
        $region16: #{tpu_custom_call.1} parent=11 // pred_fallthru
          _
        // Predicated region
        $region17: #{tpu_custom_call.1} parent=11 // pred_check
          %p311 = pneg %p63
        $region18: #{tpu_custom_call.1} parent=11 // pred_check_branch
          %313 = sbr.rel (%p311) target = $region20
        $region19: #{tpu_custom_call.1} parent=11 // pred_region
          _
        $region20: #{tpu_custom_call.1} parent=11 // pred_fallthru
          _
        // Predicated region
        $region21: #{tpu_custom_call.1} parent=11 // pred_check
          %p314 = pneg %p84
        $region22: #{tpu_custom_call.1} parent=11 // pred_check_branch
          %316 = sbr.rel (%p314) target = $region24
        $region23: #{tpu_custom_call.1} parent=11 // pred_region
          _
        $region24: #{tpu_custom_call.1} parent=11 // pred_fallthru
          _
        // Predicated region
        $region25: #{tpu_custom_call.1} parent=11 // pred_check
          %p317 = pneg %p105
        $region26: #{tpu_custom_call.1} parent=11 // pred_check_branch
          %319 = sbr.rel (%p317) target = $region28
        $region27: #{tpu_custom_call.1} parent=11 // pred_region
          _
        $region28: #{tpu_custom_call.1} parent=11 // pred_fallthru
          _
        // Predicated region
        $region29: #{tpu_custom_call.1} parent=11 // pred_check
          %p320 = pneg %p126
        $region30: #{tpu_custom_call.1} parent=11 // pred_check_branch
          %322 = sbr.rel (%p320) target = $region32
        $region31: #{tpu_custom_call.1} parent=11 // pred_region
          _
        $region32: #{tpu_custom_call.1} parent=11 // pred_fallthru
          _
        // Predicated region
        $region33: #{tpu_custom_call.1} parent=11 // pred_check
          %p323 = pneg %p147
        $region34: #{tpu_custom_call.1} parent=11 // pred_check_branch
          %325 = sbr.rel (%p323) target = $region36
        $region35: #{tpu_custom_call.1} parent=11 // pred_region
          _
        $region36: #{tpu_custom_call.1} parent=11 // pred_fallthru
          _
        // Predicated region
        $region37: #{tpu_custom_call.1} parent=11 // pred_check
          %p326 = pneg %p194
        $region38: #{tpu_custom_call.1} parent=11 // pred_check_branch
          %328 = sbr.rel (%p326) target = $region40
        $region39: #{tpu_custom_call.1} parent=11 // pred_region
          _
        $region40: #{tpu_custom_call.1} parent=11 // pred_fallthru
          _
        // Predicated region
        $region41: #{tpu_custom_call.1} parent=11 // pred_check
          %p329 = pneg %p267
        $region42: #{tpu_custom_call.1} parent=11 // pred_check_branch
          %331 = sbr.rel (%p329) target = $region44
        $region43: #{tpu_custom_call.1} parent=11 // pred_region
          %333 = vsyncadd [#allocation5], 0
          %s335 = sshll.u32 %s10, 4
          %s336 = int_to_ptr.vmem [resolvable:$true] %s335
          %338 = dma.vmem_to_smem %s336, 16, [#allocation3], [#allocation5]
        $region44: #{tpu_custom_call.1} parent=11 // pred_fallthru
          _
      $region12: #{tpu_custom_call.1} parent=5 // pred_fallthru
        _
      %p339 = scmp.lt.s32.totalorder %s21, 2
      // Predicated region
      $region45: #{tpu_custom_call.1} parent=5 // pred_check
        %p340 = pneg %p339
      $region46: #{tpu_custom_call.1} parent=5 // pred_check_branch
        %342 = sbr.rel (%p340) target = $region48
      $region47: #{tpu_custom_call.1} parent=5 // pred_region
        // Predicated region
        $region49: #{tpu_custom_call.1} parent=47 // pred_check
          %p343 = pneg %p167
        $region50: #{tpu_custom_call.1} parent=47 // pred_check_branch
          %345 = sbr.rel (%p343) target = $region52
        $region51: #{tpu_custom_call.1} parent=47 // pred_region
          %p346 = scmp.lt.s32.totalorder %s21, 1
          %s347 = scalar_select %p346, %s21, 1
          %s348 = smul.addr %s347, 8
          %s349 = scalar_lea.vmem %s6, %s348
        $region52: #{tpu_custom_call.1} parent=47 // pred_fallthru
          _
        // Predicated region
        $region53: #{tpu_custom_call.1} parent=47 // pred_check
          %p350 = pneg %p214
        $region54: #{tpu_custom_call.1} parent=47 // pred_check_branch
          %352 = sbr.rel (%p350) target = $region56
        $region55: #{tpu_custom_call.1} parent=47 // pred_region
          %p353 = scmp.lt.s32.totalorder %s21, 1
          %s354 = scalar_select %p353, %s21, 1
          %s355 = smul.addr %s354, 8
          %s356 = scalar_lea.vmem %s8, %s355
        $region56: #{tpu_custom_call.1} parent=47 // pred_fallthru
          _
        // Predicated region
        $region57: #{tpu_custom_call.1} parent=47 // pred_check
          %p357 = pneg %p240
        $region58: #{tpu_custom_call.1} parent=47 // pred_check_branch
          %359 = sbr.rel (%p357) target = $region60
        $region59: #{tpu_custom_call.1} parent=47 // pred_region
          %s360 = sand.u32 %s230, 1
          %s361 = sand.u32 %s230, 1
          %s362 = smul.addr %s361, 16
          %s363 = scalar_lea.vmem [#allocation2], %s362
          %s364 = smul.addr %s21, 8
          %s365 = scalar_lea.vmem %s9, %s364
          // Predicated region
          $region61: #{tpu_custom_call.1} parent=59 // pred_check
            _
          $region62: #{tpu_custom_call.1} parent=59 // pred_check_branch
            %367 = sbr.rel (0) target = $region64
          $region63: #{tpu_custom_call.1} parent=59 // pred_region
            // Predicated region
            $region65: #{tpu_custom_call.1} parent=63 // pred_check
              _
            $region66: #{tpu_custom_call.1} parent=63 // pred_check_branch
              %369 = sbr.rel (0) target = $region68
            $region67: #{tpu_custom_call.1} parent=63 // pred_region
              // Predicated region
              $region80: #{tpu_custom_call.1} parent=67 // pred_check
                _
              $region81: #{tpu_custom_call.1} parent=67 // pred_check_branch
                %387 = sbr.rel (0) target = $region83
              $region82: #{tpu_custom_call.1} parent=67 // pred_region
                loop: start=0, step=1, limit=1
                $region84: #{tpu_custom_call.1} parent=82 // loop_pre_header
                  _
                $region85: #{tpu_custom_call.1} parent=82 // loop_header
                  %s389 = sphi 0, %s393
                  %p390 = scmp.ge.s32.totalorder %s389, 1
                  %s394 = sphi %s365, %s365
                  %s395 = sphi %s363, %s363
                $region86: #{tpu_custom_call.1} parent=82 // loop_header_branch
                  %392 = sbr.rel (%p390) target = $region90
                $region87: #{tpu_custom_call.1} parent=82 // loop_body
                  %v396 = vld [vmem:[%s394] sm:$0xff]
                  %397 = vst [vmem:[%s395] sm:$0xff] %v396
                  %v398 = vld [vmem:[%s394 + $0x10] sm:$0xff]
                  %399 = vst [vmem:[%s395 + $0x8] sm:$0xff] %v398
                $region88: #{tpu_custom_call.1} parent=82 // loop_footer
                  %s393 = sadd.s32 1, %s389
                $region89: #{tpu_custom_call.1} parent=82 // loop_footer_branch
                  %388 = sbr.rel target = $region85
                $region90: #{tpu_custom_call.1} parent=82 // loop_exit
                  _
              $region83: #{tpu_custom_call.1} parent=67 // pred_fallthru
                _
              // Predicated region
              $region91: #{tpu_custom_call.1} parent=67 // pred_check
                _
              $region92: #{tpu_custom_call.1} parent=67 // pred_check_branch
                %401 = sbr.rel target = $region94
              $region93: #{tpu_custom_call.1} parent=67 // pred_region
                _
              $region94: #{tpu_custom_call.1} parent=67 // pred_fallthru
                _
            $region68: #{tpu_custom_call.1} parent=63 // pred_fallthru
              _
            // Predicated region
            $region69: #{tpu_custom_call.1} parent=63 // pred_check
              _
            $region70: #{tpu_custom_call.1} parent=63 // pred_check_branch
              %371 = sbr.rel target = $region72
            $region71: #{tpu_custom_call.1} parent=63 // pred_region
              %s373 = ssub.s32 256, 1
              loop: start=0, step=1, limit=1
              $region73: #{tpu_custom_call.1} parent=71 // loop_pre_header
                _
              $region74: #{tpu_custom_call.1} parent=71 // loop_header
                %s375 = sphi 0, %s379
                %p376 = scmp.ge.s32.totalorder %s375, 1
                %s380 = sphi %s365, %s365
                %s381 = sphi %s363, %s363
              $region75: #{tpu_custom_call.1} parent=71 // loop_header_branch
                %378 = sbr.rel (%p376) target = $region79
              $region76: #{tpu_custom_call.1} parent=71 // loop_body
                %v382 = vld [vmem:[%s380] sm:%s373]
                %383 = vst [vmem:[%s381] sm:%s373] %v382
                %v384 = vld [vmem:[%s380 + $0x10] sm:%s373]
                %385 = vst [vmem:[%s381 + $0x8] sm:%s373] %v384
              $region77: #{tpu_custom_call.1} parent=71 // loop_footer
                %s379 = sadd.s32 1, %s375
              $region78: #{tpu_custom_call.1} parent=71 // loop_footer_branch
                %374 = sbr.rel target = $region74
              $region79: #{tpu_custom_call.1} parent=71 // loop_exit
                _
            $region72: #{tpu_custom_call.1} parent=63 // pred_fallthru
              _
          $region64: #{tpu_custom_call.1} parent=59 // pred_fallthru
            _
          %402 = vnop
        $region60: #{tpu_custom_call.1} parent=47 // pred_fallthru
          _
      $region48: #{tpu_custom_call.1} parent=5 // pred_fallthru
        _
      %p403 = scmp.le.s32.totalorder 1, %s21
      %p404 = scmp.lt.s32.totalorder %s21, 3
      %p405 = pnand %p403, %p404
      %p406 = pneg %p405
      // Predicated region
      $region95: #{tpu_custom_call.1} parent=5 // pred_check
        _
      $region96: #{tpu_custom_call.1} parent=5 // pred_check_branch
        %408 = sbr.rel (%p405) target = $region98
      $region97: #{tpu_custom_call.1} parent=5 // pred_region
        %s409 = ssub.s32 %s21, 1
        %s410 = sand.u32 %s233, 1
        %s411 = sand.u32 %s233, 1
        %s412 = smul.addr %s411, 16
        %s413 = scalar_lea.vmem [#allocation2], %s412
        // Predicated region
        $region99: #{tpu_custom_call.1} parent=97 // pred_check
          %p414 = pneg %p246
        $region100: #{tpu_custom_call.1} parent=97 // pred_check_branch
          %416 = sbr.rel (%p414) target = $region102
        $region101: #{tpu_custom_call.1} parent=97 // pred_region
          _
        $region102: #{tpu_custom_call.1} parent=97 // pred_fallthru
          _
        // Predicated region
        $region103: #{tpu_custom_call.1} parent=97 // pred_check
          %p417 = pneg %p267
        $region104: #{tpu_custom_call.1} parent=97 // pred_check_branch
          %419 = sbr.rel (%p417) target = $region106
        $region105: #{tpu_custom_call.1} parent=97 // pred_region
          %421 = dma.done [#allocation5], 16
        $region106: #{tpu_custom_call.1} parent=97 // pred_fallthru
          _
        %422 = sfence
        %p423 = pneg %p42
        %p424 = pneg %p39
        %p425 = pneg %p63
        %p426 = pneg %p60
        %p427 = pneg %p84
        %p428 = pneg %p81
        %p429 = pneg %p105
        %p430 = pneg %p102
        %p431 = pneg %p126
        %p432 = pneg %p123
        %p433 = pneg %p147
        %p434 = pneg %p144
        %p435 = scmp.lt.s32.totalorder %s26, 1
        %s436 = scalar_select %p435, %s26, 1
        %s437 = smul.addr %s436, 8
        %s438 = scalar_lea.vmem %s6, %s437
        %p439 = pneg %p173
        %p440 = pneg %p170
        %p441 = pneg %p194
        %p442 = pneg %p191
        %p443 = scmp.lt.s32.totalorder %s26, 1
        %s444 = scalar_select %p443, %s26, 1
        %s445 = smul.addr %s444, 8
        %s446 = scalar_lea.vmem %s8, %s445
        %p447 = pneg %p220
        %p448 = pneg %p217
        %s449 = sand.u32 %s233, 1
        %s450 = sand.u32 %s233, 1
        %s451 = smul.addr %s450, 16
        %s452 = scalar_lea.vmem [#allocation2], %s451
        %p453 = pneg %p246
        %p454 = pneg %p243
        %p455 = pneg %p267
        %p456 = pneg %p264
        %p457 = pneg %p293
        %p458 = pneg %p290
        %s459 = sand.u32 %s280, 1
        %s460 = scalar_lea.sflag [#allocation4], %s459
        %s461 = sand.u32 %s280, 1
        %s462 = smul.addr %s461, 16
        %s463 = scalar_lea.vmem [#allocation6], %s462
        %p464 = scmp.lt.s32.totalorder %s26, 1
        %s465 = scalar_select %p464, %s26, 1
        %s466 = smul.addr %s465, 8
        %s467 = scalar_lea.vmem %s6, %s466
        %p468 = scmp.lt.s32.totalorder %s26, 1
        %s469 = scalar_select %p468, %s26, 1
        %s470 = smul.addr %s469, 8
        %s471 = scalar_lea.vmem %s8, %s470
        %v472 = vld [vmem:[%s7] sm:$0xff]
        %v473 = vld [vmem:[%s7 + $0x8] sm:$0xff]
        %v474 = vld [vmem:[%s2] sm:$0xff]
        %v475 = vld [vmem:[%s2 + $0x8] sm:$0xff]
        %v476 = vld [vmem:[%s0] sm:$0x7]
        %v477 = vld [vmem:[%s3] sm:$0xff]
        %v478 = vld [vmem:[%s3 + $0x8] sm:$0xff]
        %480 = vset.pattern.permute.xlu0 0
        %481 = vperm.xlu0 %480, %v477
        %v482 = vpop.permute.xlu0 %481
        %485 = vset.pattern.permute.xlu0 0
        %486 = vperm.xlu0 %485, %v478
        %v487 = vpop.permute.xlu0 %486
        %vm489 = vcmask 23552
        %v491 = vsel %vm489, %v474, 0
        %v494 = vsel %vm489, %v475, 0
        %vm496 = vcmask 1042432
        %v498 = vsel %vm496, %v476, 0
        %500 = vmatpush.msra.mxu0 0.0
        %501 = vmatpush.msra.mxu0 0.0
        %502 = vmatpush.msra.mxu0 0.0
        %503 = vmatpush.msra.mxu0 0.0
        %504 = vmatpush.msra.mxu0 0.0
        %505 = vmatpush.msra.mxu0 0.0
        %506 = vmatpush.msra.mxu0 0.0
        %507 = vmatpush.msra.mxu0 0.0
        %508 = vmatpush.msra.mxu0 0.0
        %509 = vmatpush.msra.mxu0 0.0
        %510 = vmatpush.msra.mxu0 0.0
        %511 = vmatpush.msra.mxu0 0.0
        %512 = vmatpush.msra.mxu0 0.0
        %513 = vmatpush.msra.mxu0 0.0
        %514 = vmatpush.msra.mxu0 0.0
        %515 = vmatpush.msra.mxu0 %v498
        %516 = vmatmul.f32.gmra.mxu0 %v491
        %v517 = vpop.f32.mrf.mxu0
        %v518 = vadd.f32 %v482, %v517
        %519 = vmatmul.f32.gmra.mxu0 %v494
        %v520 = vpop.f32.mrf.mxu0
        %v521 = vadd.f32 %v487, %v520
        %522 = vdwg.mxu0
        %524 = vset.pattern.permute.xlu0 0
        %525 = vperm.xlu0 %524, %v472
        %v526 = vpop.permute.xlu0 %525
        %529 = vset.pattern.permute.xlu0 0
        %530 = vperm.xlu0 %529, %v473
        %v531 = vpop.permute.xlu0 %530
        %v533 = vmul.f32 %v526, %v518
        %v534 = vmul.f32 %v531, %v521
        %v535 = vand.u32 2147483647, %v533
        %vm536 = vcmp.le.f32.partialorder %v535, 0.7853982
        %vm537 = vcmp.lt.s32.totalorder %v533, 0
        %v538 = vand.u32 %v533, 2139095040
        %v539 = vshrl.u32 %v538, 23
        %v540 = vsub.s32 %v539, 127
        %v541 = vand.u32 2147483647, %v533
        %v542 = vand.u32 %v541, 8388607
        %v543 = vor.u32 %v542, 8388608
        %v544 = vsub.s32 0, %v543
        %v545 = vadd.s32 %v540, 1
        %vm546 = vcmp.gt.s32.totalorder %v545, 0
        %v547 = vsel %vm546, %v545, 0
        %v548 = vshrl.u32 %v547, 5
        %v549 = vand.u32 %v547, 31
        %v550 = vsub.s32 32, %v549
        %v551 = vshrl.u32 683565275, %v550
        %v552 = vshll.u32 683565275, %v549
        %v553 = vshrl.u32 2475754826, %v550
        %v554 = vor.u32 %v552, %v553
        %v555 = vshll.u32 2475754826, %v549
        %v556 = vshrl.u32 2131351028, %v550
        %v557 = vor.u32 %v555, %v556
        %v558 = vshll.u32 2131351028, %v549
        %v559 = vshrl.u32 2102212464, %v550
        %v560 = vor.u32 %v558, %v559
        %v561 = vshll.u32 2102212464, %v549
        %v562 = vshrl.u32 920167782, %v550
        %v563 = vor.u32 %v561, %v562
        %v564 = vshll.u32 920167782, %v549
        %v565 = vshrl.u32 1326507024, %v550
        %v566 = vor.u32 %v564, %v565
        %vm567 = vcmp.lt.s32.totalorder %v548, 1
        %vm568 = vcmp.lt.s32.totalorder %v548, 2
        %vm569 = vcmp.lt.s32.totalorder %v548, 3
        %vm570 = vcmp.lt.s32.totalorder %v548, 4
        %v571 = vsel %vm567, %v551, %v554
        %v572 = vsel %vm570, %v560, 2102212464
        %v573 = vsel %vm569, %v557, %v572
        %v574 = vsel %vm568, %v571, %v573
        %v575 = vsel %vm567, %v554, %v557
        %v576 = vsel %vm570, %v563, 920167782
        %v577 = vsel %vm569, %v560, %v576
        %v578 = vsel %vm568, %v575, %v577
        %v579 = vsel %vm567, %v557, %v560
        %v580 = vsel %vm570, %v566, 1326507024
        %v581 = vsel %vm569, %v563, %v580
        %v582 = vsel %vm568, %v579, %v581
        %v583 = vshll.u32 %v543, 8
        %v584 = vand.u32 %v583, 65535
        %v585 = vshrl.u32 %v583, 16
        %v586 = vand.u32 %v582, 65535
        %v587 = vshrl.u32 %v582, 16
        %v588 = vmul.u32 %v584, %v586
        %v589 = vmul.u32 %v584, %v587
        %v590 = vmul.u32 %v585, %v586
        %v591 = vmul.u32 %v585, %v587
        %v592 = vshll.u32 %v589, 16
        %v593 = vshrl.u32 %v589, 16
        %v594 = vshll.u32 %v590, 16
        %v595 = vshrl.u32 %v590, 16
        %vm596 = vc.u32 %v588, %v592
        %v597 = vsel %vm596, 1, 0
        %v598 = vadd.s32 %v588, %v592
        %v599 = vadd.s32 %v591, %v597
        %vm600 = vc.u32 %v598, %v594
        %v601 = vsel %vm600, 1, 0
        %v602 = vadd.s32 %v598, %v594
        %v603 = vadd.s32 %v599, %v601
        %v604 = vadd.s32 %v603, %v593
        %v605 = vadd.s32 %v604, %v595
        %v606 = vand.u32 %v583, 65535
        %v607 = vshrl.u32 %v583, 16
        %v608 = vand.u32 %v578, 65535
        %v609 = vshrl.u32 %v578, 16
        %v610 = vmul.u32 %v606, %v608
        %v611 = vmul.u32 %v606, %v609
        %v612 = vmul.u32 %v607, %v608
        %v613 = vmul.u32 %v607, %v609
        %v614 = vshll.u32 %v611, 16
        %v615 = vshrl.u32 %v611, 16
        %v616 = vshll.u32 %v612, 16
        %v617 = vshrl.u32 %v612, 16
        %vm618 = vc.u32 %v610, %v614
        %v619 = vsel %vm618, 1, 0
        %v620 = vadd.s32 %v610, %v614
        %v621 = vadd.s32 %v613, %v619
        %vm622 = vc.u32 %v620, %v616
        %v623 = vsel %vm622, 1, 0
        %v624 = vadd.s32 %v620, %v616
        %v625 = vadd.s32 %v621, %v623
        %v626 = vadd.s32 %v625, %v615
        %v627 = vadd.s32 %v626, %v617
        %v628 = vmul.u32 %v583, %v574
        %v629 = vadd.s32 %v605, %v624
        %vm630 = vc.u32 %v605, %v624
        %v631 = vadd.s32 %v627, 1
        %v632 = vsel %vm630, %v631, %v627
        %v633 = vadd.s32 %v628, %v632
        %v634 = vadd.s32 %v633, 536870912
        %v635 = vshrl.u32 %v634, 30
        %v636 = vshll.u32 %v635, 30
        %v637 = vsub.s32 %v633, %v636
        %vm638 = vcmp.lt.s32.totalorder %v637, 0
        %v639 = vsub.s32 0, %v637
        %v640 = vsel %vm638, %v639, %v637
        %v641 = vclz %v640
        %v642 = vsub.s32 %v641, 2
        %vm643 = vcmp.gt.s32.totalorder 0, %v642
        %v644 = vsel %vm643, 0, %v642
        %v645 = vsub.s32 32, %v644
        %v646 = vshll.u32 %v637, %v644
        %v647 = vshrl.u32 %v629, %v645
        %v648 = vor.u32 %v646, %v647
        %v649 = vsub.s32 4294967266, %v644
        %v650 = vadd.s32 %v649, 127
        %v651 = vshll.u32 %v650, 23
        %v652 = vor.u32 4788187, %v651
        %v653 = vand.u32 2147483647, %v652
        %v655 = vcvt.s32.f32 %v648
        %v656 = vmul.f32 %v655, %v653
        %v657 = vxor.u32 %v656, 2147483648
        %v658 = vsel %vm537, %v657, %v656
        %v659 = vsub.s32 4, %v635
        %v660 = vsel %vm537, %v659, %v635
        %v661 = vsel %vm536, %v533, %v658
        %v662 = vsel %vm536, 0, %v660
        %v663 = vmul.f32 %v661, %v661
        %v664 = vmul.f32 %v663, -0.001358992
        %v665 = vadd.f32 %v664, 0.041655596
        %v666 = vmul.f32 %v663, %v665
        %v667 = vadd.f32 %v666, -0.4999988
        %v668 = vmul.f32 %v663, %v667
        %v669 = vadd.f32 1.0, %v668
        %v670 = vmul.f32 %v661, %v661
        %v671 = vmul.f32 %v670, -0.00019511016
        %v672 = vadd.f32 %v671, 0.008332121
        %v673 = vmul.f32 %v670, %v672
        %v674 = vadd.f32 %v673, -0.16666654
        %v675 = vmul.f32 %v670, %v674
        %v676 = vadd.f32 %v675, 1.0
        %v677 = vmul.f32 %v676, %v661
        %vm678 = vweird.f32 %v533
        %v679 = vadd.s32 %v662, 3
        %v680 = vand.u32 %v679, 3
        %vm681 = vcmp.lt.s32.totalorder %v680, 2
        %vm682 = vcmp.eq.s32.totalorder %v680, 0
        %v683 = vxor.u32 %v677, 2147483648
        %v684 = vsel %vm682, %v669, %v683
        %vm685 = vcmp.eq.s32.totalorder %v680, 2
        %v686 = vxor.u32 %v669, 2147483648
        %v687 = vsel %vm685, %v686, %v677
        %v688 = vsel %vm681, %v684, %v687
        %v689 = vsel %vm678, nan, %v688
        %v690 = vand.u32 2147483647, %v534
        %vm691 = vcmp.le.f32.partialorder %v690, 0.7853982
        %vm692 = vcmp.lt.s32.totalorder %v534, 0
        %v693 = vand.u32 %v534, 2139095040
        %v694 = vshrl.u32 %v693, 23
        %v695 = vsub.s32 %v694, 127
        %v696 = vand.u32 2147483647, %v534
        %v697 = vand.u32 %v696, 8388607
        %v698 = vor.u32 %v697, 8388608
        %v699 = vsub.s32 0, %v698
        %v700 = vadd.s32 %v695, 1
        %vm701 = vcmp.gt.s32.totalorder %v700, 0
        %v702 = vsel %vm701, %v700, 0
        %v703 = vshrl.u32 %v702, 5
        %v704 = vand.u32 %v702, 31
        %v705 = vsub.s32 32, %v704
        %v706 = vshrl.u32 683565275, %v705
        %v707 = vshll.u32 683565275, %v704
        %v708 = vshrl.u32 2475754826, %v705
        %v709 = vor.u32 %v707, %v708
        %v710 = vshll.u32 2475754826, %v704
        %v711 = vshrl.u32 2131351028, %v705
        %v712 = vor.u32 %v710, %v711
        %v713 = vshll.u32 2131351028, %v704
        %v714 = vshrl.u32 2102212464, %v705
        %v715 = vor.u32 %v713, %v714
        %v716 = vshll.u32 2102212464, %v704
        %v717 = vshrl.u32 920167782, %v705
        %v718 = vor.u32 %v716, %v717
        %v719 = vshll.u32 920167782, %v704
        %v720 = vshrl.u32 1326507024, %v705
        %v721 = vor.u32 %v719, %v720
        %vm722 = vcmp.lt.s32.totalorder %v703, 1
        %vm723 = vcmp.lt.s32.totalorder %v703, 2
        %vm724 = vcmp.lt.s32.totalorder %v703, 3
        %vm725 = vcmp.lt.s32.totalorder %v703, 4
        %v726 = vsel %vm722, %v706, %v709
        %v727 = vsel %vm725, %v715, 2102212464
        %v728 = vsel %vm724, %v712, %v727
        %v729 = vsel %vm723, %v726, %v728
        %v730 = vsel %vm722, %v709, %v712
        %v731 = vsel %vm725, %v718, 920167782
        %v732 = vsel %vm724, %v715, %v731
        %v733 = vsel %vm723, %v730, %v732
        %v734 = vsel %vm722, %v712, %v715
        %v735 = vsel %vm725, %v721, 1326507024
        %v736 = vsel %vm724, %v718, %v735
        %v737 = vsel %vm723, %v734, %v736
        %v738 = vshll.u32 %v698, 8
        %v739 = vand.u32 %v738, 65535
        %v740 = vshrl.u32 %v738, 16
        %v741 = vand.u32 %v737, 65535
        %v742 = vshrl.u32 %v737, 16
        %v743 = vmul.u32 %v739, %v741
        %v744 = vmul.u32 %v739, %v742
        %v745 = vmul.u32 %v740, %v741
        %v746 = vmul.u32 %v740, %v742
        %v747 = vshll.u32 %v744, 16
        %v748 = vshrl.u32 %v744, 16
        %v749 = vshll.u32 %v745, 16
        %v750 = vshrl.u32 %v745, 16
        %vm751 = vc.u32 %v743, %v747
        %v752 = vsel %vm751, 1, 0
        %v753 = vadd.s32 %v743, %v747
        %v754 = vadd.s32 %v746, %v752
        %vm755 = vc.u32 %v753, %v749
        %v756 = vsel %vm755, 1, 0
        %v757 = vadd.s32 %v753, %v749
        %v758 = vadd.s32 %v754, %v756
        %v759 = vadd.s32 %v758, %v748
        %v760 = vadd.s32 %v759, %v750
        %v761 = vand.u32 %v738, 65535
        %v762 = vshrl.u32 %v738, 16
        %v763 = vand.u32 %v733, 65535
        %v764 = vshrl.u32 %v733, 16
        %v765 = vmul.u32 %v761, %v763
        %v766 = vmul.u32 %v761, %v764
        %v767 = vmul.u32 %v762, %v763
        %v768 = vmul.u32 %v762, %v764
        %v769 = vshll.u32 %v766, 16
        %v770 = vshrl.u32 %v766, 16
        %v771 = vshll.u32 %v767, 16
        %v772 = vshrl.u32 %v767, 16
        %vm773 = vc.u32 %v765, %v769
        %v774 = vsel %vm773, 1, 0
        %v775 = vadd.s32 %v765, %v769
        %v776 = vadd.s32 %v768, %v774
        %vm777 = vc.u32 %v775, %v771
        %v778 = vsel %vm777, 1, 0
        %v779 = vadd.s32 %v775, %v771
        %v780 = vadd.s32 %v776, %v778
        %v781 = vadd.s32 %v780, %v770
        %v782 = vadd.s32 %v781, %v772
        %v783 = vmul.u32 %v738, %v729
        %v784 = vadd.s32 %v760, %v779
        %vm785 = vc.u32 %v760, %v779
        %v786 = vadd.s32 %v782, 1
        %v787 = vsel %vm785, %v786, %v782
        %v788 = vadd.s32 %v783, %v787
        %v789 = vadd.s32 %v788, 536870912
        %v790 = vshrl.u32 %v789, 30
        %v791 = vshll.u32 %v790, 30
        %v792 = vsub.s32 %v788, %v791
        %vm793 = vcmp.lt.s32.totalorder %v792, 0
        %v794 = vsub.s32 0, %v792
        %v795 = vsel %vm793, %v794, %v792
        %v796 = vclz %v795
        %v797 = vsub.s32 %v796, 2
        %vm798 = vcmp.gt.s32.totalorder 0, %v797
        %v799 = vsel %vm798, 0, %v797
        %v800 = vsub.s32 32, %v799
        %v801 = vshll.u32 %v792, %v799
        %v802 = vshrl.u32 %v784, %v800
        %v803 = vor.u32 %v801, %v802
        %v804 = vsub.s32 4294967266, %v799
        %v805 = vadd.s32 %v804, 127
        %v806 = vshll.u32 %v805, 23
        %v807 = vor.u32 4788187, %v806
        %v808 = vand.u32 2147483647, %v807
        %v810 = vcvt.s32.f32 %v803
        %v811 = vmul.f32 %v810, %v808
        %v812 = vxor.u32 %v811, 2147483648
        %v813 = vsel %vm692, %v812, %v811
        %v814 = vsub.s32 4, %v790
        %v815 = vsel %vm692, %v814, %v790
        %v816 = vsel %vm691, %v534, %v813
        %v817 = vsel %vm691, 0, %v815
        %v818 = vmul.f32 %v816, %v816
        %v819 = vmul.f32 %v818, -0.001358992
        %v820 = vadd.f32 %v819, 0.041655596
        %v821 = vmul.f32 %v818, %v820
        %v822 = vadd.f32 %v821, -0.4999988
        %v823 = vmul.f32 %v818, %v822
        %v824 = vadd.f32 1.0, %v823
        %v825 = vmul.f32 %v816, %v816
        %v826 = vmul.f32 %v825, -0.00019511016
        %v827 = vadd.f32 %v826, 0.008332121
        %v828 = vmul.f32 %v825, %v827
        %v829 = vadd.f32 %v828, -0.16666654
        %v830 = vmul.f32 %v825, %v829
        %v831 = vadd.f32 %v830, 1.0
        %v832 = vmul.f32 %v831, %v816
        %vm833 = vweird.f32 %v534
        %v834 = vadd.s32 %v817, 3
        %v835 = vand.u32 %v834, 3
        %vm836 = vcmp.lt.s32.totalorder %v835, 2
        %vm837 = vcmp.eq.s32.totalorder %v835, 0
        %v838 = vxor.u32 %v832, 2147483648
        %v839 = vsel %vm837, %v824, %v838
        %vm840 = vcmp.eq.s32.totalorder %v835, 2
        %v841 = vxor.u32 %v824, 2147483648
        %v842 = vsel %vm840, %v841, %v832
        %v843 = vsel %vm836, %v839, %v842
        %v844 = vsel %vm833, nan, %v843
        %v845 = vld [vmem:[%s4] sm:$0xff]
        %v846 = vld [vmem:[%s4 + $0x8] sm:$0xff]
        %v847 = vld [vmem:[%s5] sm:$0xff]
        %v848 = vld [vmem:[%s5 + $0x8] sm:$0xff]
        %850 = vset.pattern.permute.xlu0 0
        %851 = vperm.xlu0 %850, %v847
        %v852 = vpop.permute.xlu0 %851
        %855 = vset.pattern.permute.xlu0 0
        %856 = vperm.xlu0 %855, %v848
        %v857 = vpop.permute.xlu0 %856
        %vm859 = vcmask 130048
        %v861 = vsel %vm859, %v845, 0
        %v864 = vsel %vm859, %v846, 0
        %866 = vmatpush.msra.mxu0 0.0
        %867 = vmatpush.msra.mxu0 0.0
        %868 = vmatpush.msra.mxu0 0.0
        %869 = vmatpush.msra.mxu0 0.0
        %870 = vmatpush.msra.mxu0 0.0
        %871 = vmatpush.msra.mxu0 0.0
        %872 = vmatpush.msra.mxu0 0.0
        %873 = vmatpush.msra.mxu0 0.0
        %874 = vmatpush.msra.mxu0 0.0
        %875 = vmatpush.msra.mxu0 0.0
        %876 = vmatpush.msra.mxu0 0.0
        %877 = vmatpush.msra.mxu0 0.0
        %878 = vmatpush.msra.mxu0 0.0
        %879 = vmatpush.msra.mxu0 0.0
        %880 = vmatpush.msra.mxu0 %v844
        %881 = vmatpush.msra.mxu0 %v689
        %882 = vmatmul.f32.gmra.mxu0 %v861
        %v883 = vpop.f32.mrf.mxu0
        %v884 = vadd.f32 %v852, %v883
        %885 = vmatmul.f32.gmra.mxu0 %v864
        %v886 = vpop.f32.mrf.mxu0
        %v887 = vadd.f32 %v857, %v886
        %888 = vdwg.mxu0
        %v889 = vmul.f32 %v526, %v884
        %v890 = vmul.f32 %v531, %v887
        %v891 = vand.u32 2147483647, %v889
        %vm892 = vcmp.le.f32.partialorder %v891, 0.7853982
        %vm893 = vcmp.lt.s32.totalorder %v889, 0
        %v894 = vand.u32 %v889, 2139095040
        %v895 = vshrl.u32 %v894, 23
        %v896 = vsub.s32 %v895, 127
        %v897 = vand.u32 2147483647, %v889
        %v898 = vand.u32 %v897, 8388607
        %v899 = vor.u32 %v898, 8388608
        %v900 = vsub.s32 0, %v899
        %v901 = vadd.s32 %v896, 1
        %vm902 = vcmp.gt.s32.totalorder %v901, 0
        %v903 = vsel %vm902, %v901, 0
        %v904 = vshrl.u32 %v903, 5
        %v905 = vand.u32 %v903, 31
        %v906 = vsub.s32 32, %v905
        %v907 = vshrl.u32 683565275, %v906
        %v908 = vshll.u32 683565275, %v905
        %v909 = vshrl.u32 2475754826, %v906
        %v910 = vor.u32 %v908, %v909
        %v911 = vshll.u32 2475754826, %v905
        %v912 = vshrl.u32 2131351028, %v906
        %v913 = vor.u32 %v911, %v912
        %v914 = vshll.u32 2131351028, %v905
        %v915 = vshrl.u32 2102212464, %v906
        %v916 = vor.u32 %v914, %v915
        %v917 = vshll.u32 2102212464, %v905
        %v918 = vshrl.u32 920167782, %v906
        %v919 = vor.u32 %v917, %v918
        %v920 = vshll.u32 920167782, %v905
        %v921 = vshrl.u32 1326507024, %v906
        %v922 = vor.u32 %v920, %v921
        %vm923 = vcmp.lt.s32.totalorder %v904, 1
        %vm924 = vcmp.lt.s32.totalorder %v904, 2
        %vm925 = vcmp.lt.s32.totalorder %v904, 3
        %vm926 = vcmp.lt.s32.totalorder %v904, 4
        %v927 = vsel %vm923, %v907, %v910
        %v928 = vsel %vm926, %v916, 2102212464
        %v929 = vsel %vm925, %v913, %v928
        %v930 = vsel %vm924, %v927, %v929
        %v931 = vsel %vm923, %v910, %v913
        %v932 = vsel %vm926, %v919, 920167782
        %v933 = vsel %vm925, %v916, %v932
        %v934 = vsel %vm924, %v931, %v933
        %v935 = vsel %vm923, %v913, %v916
        %v936 = vsel %vm926, %v922, 1326507024
        %v937 = vsel %vm925, %v919, %v936
        %v938 = vsel %vm924, %v935, %v937
        %v939 = vshll.u32 %v899, 8
        %v940 = vand.u32 %v939, 65535
        %v941 = vshrl.u32 %v939, 16
        %v942 = vand.u32 %v938, 65535
        %v943 = vshrl.u32 %v938, 16
        %v944 = vmul.u32 %v940, %v942
        %v945 = vmul.u32 %v940, %v943
        %v946 = vmul.u32 %v941, %v942
        %v947 = vmul.u32 %v941, %v943
        %v948 = vshll.u32 %v945, 16
        %v949 = vshrl.u32 %v945, 16
        %v950 = vshll.u32 %v946, 16
        %v951 = vshrl.u32 %v946, 16
        %vm952 = vc.u32 %v944, %v948
        %v953 = vsel %vm952, 1, 0
        %v954 = vadd.s32 %v944, %v948
        %v955 = vadd.s32 %v947, %v953
        %vm956 = vc.u32 %v954, %v950
        %v957 = vsel %vm956, 1, 0
        %v958 = vadd.s32 %v954, %v950
        %v959 = vadd.s32 %v955, %v957
        %v960 = vadd.s32 %v959, %v949
        %v961 = vadd.s32 %v960, %v951
        %v962 = vand.u32 %v939, 65535
        %v963 = vshrl.u32 %v939, 16
        %v964 = vand.u32 %v934, 65535
        %v965 = vshrl.u32 %v934, 16
        %v966 = vmul.u32 %v962, %v964
        %v967 = vmul.u32 %v962, %v965
        %v968 = vmul.u32 %v963, %v964
        %v969 = vmul.u32 %v963, %v965
        %v970 = vshll.u32 %v967, 16
        %v971 = vshrl.u32 %v967, 16
        %v972 = vshll.u32 %v968, 16
        %v973 = vshrl.u32 %v968, 16
        %vm974 = vc.u32 %v966, %v970
        %v975 = vsel %vm974, 1, 0
        %v976 = vadd.s32 %v966, %v970
        %v977 = vadd.s32 %v969, %v975
        %vm978 = vc.u32 %v976, %v972
        %v979 = vsel %vm978, 1, 0
        %v980 = vadd.s32 %v976, %v972
        %v981 = vadd.s32 %v977, %v979
        %v982 = vadd.s32 %v981, %v971
        %v983 = vadd.s32 %v982, %v973
        %v984 = vmul.u32 %v939, %v930
        %v985 = vadd.s32 %v961, %v980
        %vm986 = vc.u32 %v961, %v980
        %v987 = vadd.s32 %v983, 1
        %v988 = vsel %vm986, %v987, %v983
        %v989 = vadd.s32 %v984, %v988
        %v990 = vadd.s32 %v989, 536870912
        %v991 = vshrl.u32 %v990, 30
        %v992 = vshll.u32 %v991, 30
        %v993 = vsub.s32 %v989, %v992
        %vm994 = vcmp.lt.s32.totalorder %v993, 0
        %v995 = vsub.s32 0, %v993
        %v996 = vsel %vm994, %v995, %v993
        %v997 = vclz %v996
        %v998 = vsub.s32 %v997, 2
        %vm999 = vcmp.gt.s32.totalorder 0, %v998
        %v1000 = vsel %vm999, 0, %v998
        %v1001 = vsub.s32 32, %v1000
        %v1002 = vshll.u32 %v993, %v1000
        %v1003 = vshrl.u32 %v985, %v1001
        %v1004 = vor.u32 %v1002, %v1003
        %v1005 = vsub.s32 4294967266, %v1000
        %v1006 = vadd.s32 %v1005, 127
        %v1007 = vshll.u32 %v1006, 23
        %v1008 = vor.u32 4788187, %v1007
        %v1009 = vand.u32 2147483647, %v1008
        %v1011 = vcvt.s32.f32 %v1004
        %v1012 = vmul.f32 %v1011, %v1009
        %v1013 = vxor.u32 %v1012, 2147483648
        %v1014 = vsel %vm893, %v1013, %v1012
        %v1015 = vsub.s32 4, %v991
        %v1016 = vsel %vm893, %v1015, %v991
        %v1017 = vsel %vm892, %v889, %v1014
        %v1018 = vsel %vm892, 0, %v1016
        %v1019 = vmul.f32 %v1017, %v1017
        %v1020 = vmul.f32 %v1019, -0.001358992
        %v1021 = vadd.f32 %v1020, 0.041655596
        %v1022 = vmul.f32 %v1019, %v1021
        %v1023 = vadd.f32 %v1022, -0.4999988
        %v1024 = vmul.f32 %v1019, %v1023
        %v1025 = vadd.f32 1.0, %v1024
        %v1026 = vmul.f32 %v1017, %v1017
        %v1027 = vmul.f32 %v1026, -0.00019511016
        %v1028 = vadd.f32 %v1027, 0.008332121
        %v1029 = vmul.f32 %v1026, %v1028
        %v1030 = vadd.f32 %v1029, -0.16666654
        %v1031 = vmul.f32 %v1026, %v1030
        %v1032 = vadd.f32 %v1031, 1.0
        %v1033 = vmul.f32 %v1032, %v1017
        %vm1034 = vweird.f32 %v889
        %v1035 = vadd.s32 %v1018, 3
        %v1036 = vand.u32 %v1035, 3
        %vm1037 = vcmp.lt.s32.totalorder %v1036, 2
        %vm1038 = vcmp.eq.s32.totalorder %v1036, 0
        %v1039 = vxor.u32 %v1033, 2147483648
        %v1040 = vsel %vm1038, %v1025, %v1039
        %vm1041 = vcmp.eq.s32.totalorder %v1036, 2
        %v1042 = vxor.u32 %v1025, 2147483648
        %v1043 = vsel %vm1041, %v1042, %v1033
        %v1044 = vsel %vm1037, %v1040, %v1043
        %v1045 = vsel %vm1034, nan, %v1044
        %v1046 = vand.u32 2147483647, %v890
        %vm1047 = vcmp.le.f32.partialorder %v1046, 0.7853982
        %vm1048 = vcmp.lt.s32.totalorder %v890, 0
        %v1049 = vand.u32 %v890, 2139095040
        %v1050 = vshrl.u32 %v1049, 23
        %v1051 = vsub.s32 %v1050, 127
        %v1052 = vand.u32 2147483647, %v890
        %v1053 = vand.u32 %v1052, 8388607
        %v1054 = vor.u32 %v1053, 8388608
        %v1055 = vsub.s32 0, %v1054
        %v1056 = vadd.s32 %v1051, 1
        %vm1057 = vcmp.gt.s32.totalorder %v1056, 0
        %v1058 = vsel %vm1057, %v1056, 0
        %v1059 = vshrl.u32 %v1058, 5
        %v1060 = vand.u32 %v1058, 31
        %v1061 = vsub.s32 32, %v1060
        %v1062 = vshrl.u32 683565275, %v1061
        %v1063 = vshll.u32 683565275, %v1060
        %v1064 = vshrl.u32 2475754826, %v1061
        %v1065 = vor.u32 %v1063, %v1064
        %v1066 = vshll.u32 2475754826, %v1060
        %v1067 = vshrl.u32 2131351028, %v1061
        %v1068 = vor.u32 %v1066, %v1067
        %v1069 = vshll.u32 2131351028, %v1060
        %v1070 = vshrl.u32 2102212464, %v1061
        %v1071 = vor.u32 %v1069, %v1070
        %v1072 = vshll.u32 2102212464, %v1060
        %v1073 = vshrl.u32 920167782, %v1061
        %v1074 = vor.u32 %v1072, %v1073
        %v1075 = vshll.u32 920167782, %v1060
        %v1076 = vshrl.u32 1326507024, %v1061
        %v1077 = vor.u32 %v1075, %v1076
        %vm1078 = vcmp.lt.s32.totalorder %v1059, 1
        %vm1079 = vcmp.lt.s32.totalorder %v1059, 2
        %vm1080 = vcmp.lt.s32.totalorder %v1059, 3
        %vm1081 = vcmp.lt.s32.totalorder %v1059, 4
        %v1082 = vsel %vm1078, %v1062, %v1065
        %v1083 = vsel %vm1081, %v1071, 2102212464
        %v1084 = vsel %vm1080, %v1068, %v1083
        %v1085 = vsel %vm1079, %v1082, %v1084
        %v1086 = vsel %vm1078, %v1065, %v1068
        %v1087 = vsel %vm1081, %v1074, 920167782
        %v1088 = vsel %vm1080, %v1071, %v1087
        %v1089 = vsel %vm1079, %v1086, %v1088
        %v1090 = vsel %vm1078, %v1068, %v1071
        %v1091 = vsel %vm1081, %v1077, 1326507024
        %v1092 = vsel %vm1080, %v1074, %v1091
        %v1093 = vsel %vm1079, %v1090, %v1092
        %v1094 = vshll.u32 %v1054, 8
        %v1095 = vand.u32 %v1094, 65535
        %v1096 = vshrl.u32 %v1094, 16
        %v1097 = vand.u32 %v1093, 65535
        %v1098 = vshrl.u32 %v1093, 16
        %v1099 = vmul.u32 %v1095, %v1097
        %v1100 = vmul.u32 %v1095, %v1098
        %v1101 = vmul.u32 %v1096, %v1097
        %v1102 = vmul.u32 %v1096, %v1098
        %v1103 = vshll.u32 %v1100, 16
        %v1104 = vshrl.u32 %v1100, 16
        %v1105 = vshll.u32 %v1101, 16
        %v1106 = vshrl.u32 %v1101, 16
        %vm1107 = vc.u32 %v1099, %v1103
        %v1108 = vsel %vm1107, 1, 0
        %v1109 = vadd.s32 %v1099, %v1103
        %v1110 = vadd.s32 %v1102, %v1108
        %vm1111 = vc.u32 %v1109, %v1105
        %v1112 = vsel %vm1111, 1, 0
        %v1113 = vadd.s32 %v1109, %v1105
        %v1114 = vadd.s32 %v1110, %v1112
        %v1115 = vadd.s32 %v1114, %v1104
        %v1116 = vadd.s32 %v1115, %v1106
        %v1117 = vand.u32 %v1094, 65535
        %v1118 = vshrl.u32 %v1094, 16
        %v1119 = vand.u32 %v1089, 65535
        %v1120 = vshrl.u32 %v1089, 16
        %v1121 = vmul.u32 %v1117, %v1119
        %v1122 = vmul.u32 %v1117, %v1120
        %v1123 = vmul.u32 %v1118, %v1119
        %v1124 = vmul.u32 %v1118, %v1120
        %v1125 = vshll.u32 %v1122, 16
        %v1126 = vshrl.u32 %v1122, 16
        %v1127 = vshll.u32 %v1123, 16
        %v1128 = vshrl.u32 %v1123, 16
        %vm1129 = vc.u32 %v1121, %v1125
        %v1130 = vsel %vm1129, 1, 0
        %v1131 = vadd.s32 %v1121, %v1125
        %v1132 = vadd.s32 %v1124, %v1130
        %vm1133 = vc.u32 %v1131, %v1127
        %v1134 = vsel %vm1133, 1, 0
        %v1135 = vadd.s32 %v1131, %v1127
        %v1136 = vadd.s32 %v1132, %v1134
        %v1137 = vadd.s32 %v1136, %v1126
        %v1138 = vadd.s32 %v1137, %v1128
        %v1139 = vmul.u32 %v1094, %v1085
        %v1140 = vadd.s32 %v1116, %v1135
        %vm1141 = vc.u32 %v1116, %v1135
        %v1142 = vadd.s32 %v1138, 1
        %v1143 = vsel %vm1141, %v1142, %v1138
        %v1144 = vadd.s32 %v1139, %v1143
        %v1145 = vadd.s32 %v1144, 536870912
        %v1146 = vshrl.u32 %v1145, 30
        %v1147 = vshll.u32 %v1146, 30
        %v1148 = vsub.s32 %v1144, %v1147
        %vm1149 = vcmp.lt.s32.totalorder %v1148, 0
        %v1150 = vsub.s32 0, %v1148
        %v1151 = vsel %vm1149, %v1150, %v1148
        %v1152 = vclz %v1151
        %v1153 = vsub.s32 %v1152, 2
        %vm1154 = vcmp.gt.s32.totalorder 0, %v1153
        %v1155 = vsel %vm1154, 0, %v1153
        %v1156 = vsub.s32 32, %v1155
        %v1157 = vshll.u32 %v1148, %v1155
        %v1158 = vshrl.u32 %v1140, %v1156
        %v1159 = vor.u32 %v1157, %v1158
        %v1160 = vsub.s32 4294967266, %v1155
        %v1161 = vadd.s32 %v1160, 127
        %v1162 = vshll.u32 %v1161, 23
        %v1163 = vor.u32 4788187, %v1162
        %v1164 = vand.u32 2147483647, %v1163
        %v1166 = vcvt.s32.f32 %v1159
        %v1167 = vmul.f32 %v1166, %v1164
        %v1168 = vxor.u32 %v1167, 2147483648
        %v1169 = vsel %vm1048, %v1168, %v1167
        %v1170 = vsub.s32 4, %v1146
        %v1171 = vsel %vm1048, %v1170, %v1146
        %v1172 = vsel %vm1047, %v890, %v1169
        %v1173 = vsel %vm1047, 0, %v1171
        %v1174 = vmul.f32 %v1172, %v1172
        %v1175 = vmul.f32 %v1174, -0.001358992
        %v1176 = vadd.f32 %v1175, 0.041655596
        %v1177 = vmul.f32 %v1174, %v1176
        %v1178 = vadd.f32 %v1177, -0.4999988
        %v1179 = vmul.f32 %v1174, %v1178
        %v1180 = vadd.f32 1.0, %v1179
        %v1181 = vmul.f32 %v1172, %v1172
        %v1182 = vmul.f32 %v1181, -0.00019511016
        %v1183 = vadd.f32 %v1182, 0.008332121
        %v1184 = vmul.f32 %v1181, %v1183
        %v1185 = vadd.f32 %v1184, -0.16666654
        %v1186 = vmul.f32 %v1181, %v1185
        %v1187 = vadd.f32 %v1186, 1.0
        %v1188 = vmul.f32 %v1187, %v1172
        %vm1189 = vweird.f32 %v890
        %v1190 = vadd.s32 %v1173, 3
        %v1191 = vand.u32 %v1190, 3
        %vm1192 = vcmp.lt.s32.totalorder %v1191, 2
        %vm1193 = vcmp.eq.s32.totalorder %v1191, 0
        %v1194 = vxor.u32 %v1188, 2147483648
        %v1195 = vsel %vm1193, %v1180, %v1194
        %vm1196 = vcmp.eq.s32.totalorder %v1191, 2
        %v1197 = vxor.u32 %v1180, 2147483648
        %v1198 = vsel %vm1196, %v1197, %v1188
        %v1199 = vsel %vm1192, %v1195, %v1198
        %v1200 = vsel %vm1189, nan, %v1199
        %s1201 = scalar_lea.vmem %s4, 16
        %v1202 = vld [vmem:[%s1201] sm:$0xff]
        %v1203 = vld [vmem:[%s1201 + $0x8] sm:$0xff]
        %s1204 = scalar_lea.vmem %s5, 16
        %v1205 = vld [vmem:[%s1204] sm:$0xff]
        %v1206 = vld [vmem:[%s1204 + $0x8] sm:$0xff]
        %1208 = vset.pattern.permute.xlu0 0
        %1209 = vperm.xlu0 %1208, %v1205
        %v1210 = vpop.permute.xlu0 %1209
        %1213 = vset.pattern.permute.xlu0 0
        %1214 = vperm.xlu0 %1213, %v1206
        %v1215 = vpop.permute.xlu0 %1214
        %v1218 = vsel %vm859, %v1202, 0
        %v1221 = vsel %vm859, %v1203, 0
        %1223 = vmatpush.msra.mxu0 0.0
        %1224 = vmatpush.msra.mxu0 0.0
        %1225 = vmatpush.msra.mxu0 0.0
        %1226 = vmatpush.msra.mxu0 0.0
        %1227 = vmatpush.msra.mxu0 0.0
        %1228 = vmatpush.msra.mxu0 0.0
        %1229 = vmatpush.msra.mxu0 0.0
        %1230 = vmatpush.msra.mxu0 0.0
        %1231 = vmatpush.msra.mxu0 0.0
        %1232 = vmatpush.msra.mxu0 0.0
        %1233 = vmatpush.msra.mxu0 0.0
        %1234 = vmatpush.msra.mxu0 0.0
        %1235 = vmatpush.msra.mxu0 0.0
        %1236 = vmatpush.msra.mxu0 0.0
        %1237 = vmatpush.msra.mxu0 %v1200
        %1238 = vmatpush.msra.mxu0 %v1045
        %1239 = vmatmul.f32.gmra.mxu0 %v1218
        %v1240 = vpop.f32.mrf.mxu0
        %v1241 = vadd.f32 %v1210, %v1240
        %1242 = vmatmul.f32.gmra.mxu0 %v1221
        %v1243 = vpop.f32.mrf.mxu0
        %v1244 = vadd.f32 %v1215, %v1243
        %1245 = vdwg.mxu0
        %v1246 = vmul.f32 %v526, %v1241
        %v1247 = vmul.f32 %v531, %v1244
        %v1248 = vand.u32 2147483647, %v1246
        %vm1249 = vcmp.le.f32.partialorder %v1248, 0.7853982
        %vm1250 = vcmp.lt.s32.totalorder %v1246, 0
        %v1251 = vand.u32 %v1246, 2139095040
        %v1252 = vshrl.u32 %v1251, 23
        %v1253 = vsub.s32 %v1252, 127
        %v1254 = vand.u32 2147483647, %v1246
        %v1255 = vand.u32 %v1254, 8388607
        %v1256 = vor.u32 %v1255, 8388608
        %v1257 = vsub.s32 0, %v1256
        %v1258 = vadd.s32 %v1253, 1
        %vm1259 = vcmp.gt.s32.totalorder %v1258, 0
        %v1260 = vsel %vm1259, %v1258, 0
        %v1261 = vshrl.u32 %v1260, 5
        %v1262 = vand.u32 %v1260, 31
        %v1263 = vsub.s32 32, %v1262
        %v1264 = vshrl.u32 683565275, %v1263
        %v1265 = vshll.u32 683565275, %v1262
        %v1266 = vshrl.u32 2475754826, %v1263
        %v1267 = vor.u32 %v1265, %v1266
        %v1268 = vshll.u32 2475754826, %v1262
        %v1269 = vshrl.u32 2131351028, %v1263
        %v1270 = vor.u32 %v1268, %v1269
        %v1271 = vshll.u32 2131351028, %v1262
        %v1272 = vshrl.u32 2102212464, %v1263
        %v1273 = vor.u32 %v1271, %v1272
        %v1274 = vshll.u32 2102212464, %v1262
        %v1275 = vshrl.u32 920167782, %v1263
        %v1276 = vor.u32 %v1274, %v1275
        %v1277 = vshll.u32 920167782, %v1262
        %v1278 = vshrl.u32 1326507024, %v1263
        %v1279 = vor.u32 %v1277, %v1278
        %vm1280 = vcmp.lt.s32.totalorder %v1261, 1
        %vm1281 = vcmp.lt.s32.totalorder %v1261, 2
        %vm1282 = vcmp.lt.s32.totalorder %v1261, 3
        %vm1283 = vcmp.lt.s32.totalorder %v1261, 4
        %v1284 = vsel %vm1280, %v1264, %v1267
        %v1285 = vsel %vm1283, %v1273, 2102212464
        %v1286 = vsel %vm1282, %v1270, %v1285
        %v1287 = vsel %vm1281, %v1284, %v1286
        %v1288 = vsel %vm1280, %v1267, %v1270
        %v1289 = vsel %vm1283, %v1276, 920167782
        %v1290 = vsel %vm1282, %v1273, %v1289
        %v1291 = vsel %vm1281, %v1288, %v1290
        %v1292 = vsel %vm1280, %v1270, %v1273
        %v1293 = vsel %vm1283, %v1279, 1326507024
        %v1294 = vsel %vm1282, %v1276, %v1293
        %v1295 = vsel %vm1281, %v1292, %v1294
        %v1296 = vshll.u32 %v1256, 8
        %v1297 = vand.u32 %v1296, 65535
        %v1298 = vshrl.u32 %v1296, 16
        %v1299 = vand.u32 %v1295, 65535
        %v1300 = vshrl.u32 %v1295, 16
        %v1301 = vmul.u32 %v1297, %v1299
        %v1302 = vmul.u32 %v1297, %v1300
        %v1303 = vmul.u32 %v1298, %v1299
        %v1304 = vmul.u32 %v1298, %v1300
        %v1305 = vshll.u32 %v1302, 16
        %v1306 = vshrl.u32 %v1302, 16
        %v1307 = vshll.u32 %v1303, 16
        %v1308 = vshrl.u32 %v1303, 16
        %vm1309 = vc.u32 %v1301, %v1305
        %v1310 = vsel %vm1309, 1, 0
        %v1311 = vadd.s32 %v1301, %v1305
        %v1312 = vadd.s32 %v1304, %v1310
        %vm1313 = vc.u32 %v1311, %v1307
        %v1314 = vsel %vm1313, 1, 0
        %v1315 = vadd.s32 %v1311, %v1307
        %v1316 = vadd.s32 %v1312, %v1314
        %v1317 = vadd.s32 %v1316, %v1306
        %v1318 = vadd.s32 %v1317, %v1308
        %v1319 = vand.u32 %v1296, 65535
        %v1320 = vshrl.u32 %v1296, 16
        %v1321 = vand.u32 %v1291, 65535
        %v1322 = vshrl.u32 %v1291, 16
        %v1323 = vmul.u32 %v1319, %v1321
        %v1324 = vmul.u32 %v1319, %v1322
        %v1325 = vmul.u32 %v1320, %v1321
        %v1326 = vmul.u32 %v1320, %v1322
        %v1327 = vshll.u32 %v1324, 16
        %v1328 = vshrl.u32 %v1324, 16
        %v1329 = vshll.u32 %v1325, 16
        %v1330 = vshrl.u32 %v1325, 16
        %vm1331 = vc.u32 %v1323, %v1327
        %v1332 = vsel %vm1331, 1, 0
        %v1333 = vadd.s32 %v1323, %v1327
        %v1334 = vadd.s32 %v1326, %v1332
        %vm1335 = vc.u32 %v1333, %v1329
        %v1336 = vsel %vm1335, 1, 0
        %v1337 = vadd.s32 %v1333, %v1329
        %v1338 = vadd.s32 %v1334, %v1336
        %v1339 = vadd.s32 %v1338, %v1328
        %v1340 = vadd.s32 %v1339, %v1330
        %v1341 = vmul.u32 %v1296, %v1287
        %v1342 = vadd.s32 %v1318, %v1337
        %vm1343 = vc.u32 %v1318, %v1337
        %v1344 = vadd.s32 %v1340, 1
        %v1345 = vsel %vm1343, %v1344, %v1340
        %v1346 = vadd.s32 %v1341, %v1345
        %v1347 = vadd.s32 %v1346, 536870912
        %v1348 = vshrl.u32 %v1347, 30
        %v1349 = vshll.u32 %v1348, 30
        %v1350 = vsub.s32 %v1346, %v1349
        %vm1351 = vcmp.lt.s32.totalorder %v1350, 0
        %v1352 = vsub.s32 0, %v1350
        %v1353 = vsel %vm1351, %v1352, %v1350
        %v1354 = vclz %v1353
        %v1355 = vsub.s32 %v1354, 2
        %vm1356 = vcmp.gt.s32.totalorder 0, %v1355
        %v1357 = vsel %vm1356, 0, %v1355
        %v1358 = vsub.s32 32, %v1357
        %v1359 = vshll.u32 %v1350, %v1357
        %v1360 = vshrl.u32 %v1342, %v1358
        %v1361 = vor.u32 %v1359, %v1360
        %v1362 = vsub.s32 4294967266, %v1357
        %v1363 = vadd.s32 %v1362, 127
        %v1364 = vshll.u32 %v1363, 23
        %v1365 = vor.u32 4788187, %v1364
        %v1366 = vand.u32 2147483647, %v1365
        %v1368 = vcvt.s32.f32 %v1361
        %v1369 = vmul.f32 %v1368, %v1366
        %v1370 = vxor.u32 %v1369, 2147483648
        %v1371 = vsel %vm1250, %v1370, %v1369
        %v1372 = vsub.s32 4, %v1348
        %v1373 = vsel %vm1250, %v1372, %v1348
        %v1374 = vsel %vm1249, %v1246, %v1371
        %v1375 = vsel %vm1249, 0, %v1373
        %v1376 = vmul.f32 %v1374, %v1374
        %v1377 = vmul.f32 %v1376, -0.001358992
        %v1378 = vadd.f32 %v1377, 0.041655596
        %v1379 = vmul.f32 %v1376, %v1378
        %v1380 = vadd.f32 %v1379, -0.4999988
        %v1381 = vmul.f32 %v1376, %v1380
        %v1382 = vadd.f32 1.0, %v1381
        %v1383 = vmul.f32 %v1374, %v1374
        %v1384 = vmul.f32 %v1383, -0.00019511016
        %v1385 = vadd.f32 %v1384, 0.008332121
        %v1386 = vmul.f32 %v1383, %v1385
        %v1387 = vadd.f32 %v1386, -0.16666654
        %v1388 = vmul.f32 %v1383, %v1387
        %v1389 = vadd.f32 %v1388, 1.0
        %v1390 = vmul.f32 %v1389, %v1374
        %vm1391 = vweird.f32 %v1246
        %v1392 = vadd.s32 %v1375, 3
        %v1393 = vand.u32 %v1392, 3
        %vm1394 = vcmp.lt.s32.totalorder %v1393, 2
        %vm1395 = vcmp.eq.s32.totalorder %v1393, 0
        %v1396 = vxor.u32 %v1390, 2147483648
        %v1397 = vsel %vm1395, %v1382, %v1396
        %vm1398 = vcmp.eq.s32.totalorder %v1393, 2
        %v1399 = vxor.u32 %v1382, 2147483648
        %v1400 = vsel %vm1398, %v1399, %v1390
        %v1401 = vsel %vm1394, %v1397, %v1400
        %v1402 = vsel %vm1391, nan, %v1401
        %v1403 = vand.u32 2147483647, %v1247
        %vm1404 = vcmp.le.f32.partialorder %v1403, 0.7853982
        %vm1405 = vcmp.lt.s32.totalorder %v1247, 0
        %v1406 = vand.u32 %v1247, 2139095040
        %v1407 = vshrl.u32 %v1406, 23
        %v1408 = vsub.s32 %v1407, 127
        %v1409 = vand.u32 2147483647, %v1247
        %v1410 = vand.u32 %v1409, 8388607
        %v1411 = vor.u32 %v1410, 8388608
        %v1412 = vsub.s32 0, %v1411
        %v1413 = vadd.s32 %v1408, 1
        %vm1414 = vcmp.gt.s32.totalorder %v1413, 0
        %v1415 = vsel %vm1414, %v1413, 0
        %v1416 = vshrl.u32 %v1415, 5
        %v1417 = vand.u32 %v1415, 31
        %v1418 = vsub.s32 32, %v1417
        %v1419 = vshrl.u32 683565275, %v1418
        %v1420 = vshll.u32 683565275, %v1417
        %v1421 = vshrl.u32 2475754826, %v1418
        %v1422 = vor.u32 %v1420, %v1421
        %v1423 = vshll.u32 2475754826, %v1417
        %v1424 = vshrl.u32 2131351028, %v1418
        %v1425 = vor.u32 %v1423, %v1424
        %v1426 = vshll.u32 2131351028, %v1417
        %v1427 = vshrl.u32 2102212464, %v1418
        %v1428 = vor.u32 %v1426, %v1427
        %v1429 = vshll.u32 2102212464, %v1417
        %v1430 = vshrl.u32 920167782, %v1418
        %v1431 = vor.u32 %v1429, %v1430
        %v1432 = vshll.u32 920167782, %v1417
        %v1433 = vshrl.u32 1326507024, %v1418
        %v1434 = vor.u32 %v1432, %v1433
        %vm1435 = vcmp.lt.s32.totalorder %v1416, 1
        %vm1436 = vcmp.lt.s32.totalorder %v1416, 2
        %vm1437 = vcmp.lt.s32.totalorder %v1416, 3
        %vm1438 = vcmp.lt.s32.totalorder %v1416, 4
        %v1439 = vsel %vm1435, %v1419, %v1422
        %v1440 = vsel %vm1438, %v1428, 2102212464
        %v1441 = vsel %vm1437, %v1425, %v1440
        %v1442 = vsel %vm1436, %v1439, %v1441
        %v1443 = vsel %vm1435, %v1422, %v1425
        %v1444 = vsel %vm1438, %v1431, 920167782
        %v1445 = vsel %vm1437, %v1428, %v1444
        %v1446 = vsel %vm1436, %v1443, %v1445
        %v1447 = vsel %vm1435, %v1425, %v1428
        %v1448 = vsel %vm1438, %v1434, 1326507024
        %v1449 = vsel %vm1437, %v1431, %v1448
        %v1450 = vsel %vm1436, %v1447, %v1449
        %v1451 = vshll.u32 %v1411, 8
        %v1452 = vand.u32 %v1451, 65535
        %v1453 = vshrl.u32 %v1451, 16
        %v1454 = vand.u32 %v1450, 65535
        %v1455 = vshrl.u32 %v1450, 16
        %v1456 = vmul.u32 %v1452, %v1454
        %v1457 = vmul.u32 %v1452, %v1455
        %v1458 = vmul.u32 %v1453, %v1454
        %v1459 = vmul.u32 %v1453, %v1455
        %v1460 = vshll.u32 %v1457, 16
        %v1461 = vshrl.u32 %v1457, 16
        %v1462 = vshll.u32 %v1458, 16
        %v1463 = vshrl.u32 %v1458, 16
        %vm1464 = vc.u32 %v1456, %v1460
        %v1465 = vsel %vm1464, 1, 0
        %v1466 = vadd.s32 %v1456, %v1460
        %v1467 = vadd.s32 %v1459, %v1465
        %vm1468 = vc.u32 %v1466, %v1462
        %v1469 = vsel %vm1468, 1, 0
        %v1470 = vadd.s32 %v1466, %v1462
        %v1471 = vadd.s32 %v1467, %v1469
        %v1472 = vadd.s32 %v1471, %v1461
        %v1473 = vadd.s32 %v1472, %v1463
        %v1474 = vand.u32 %v1451, 65535
        %v1475 = vshrl.u32 %v1451, 16
        %v1476 = vand.u32 %v1446, 65535
        %v1477 = vshrl.u32 %v1446, 16
        %v1478 = vmul.u32 %v1474, %v1476
        %v1479 = vmul.u32 %v1474, %v1477
        %v1480 = vmul.u32 %v1475, %v1476
        %v1481 = vmul.u32 %v1475, %v1477
        %v1482 = vshll.u32 %v1479, 16
        %v1483 = vshrl.u32 %v1479, 16
        %v1484 = vshll.u32 %v1480, 16
        %v1485 = vshrl.u32 %v1480, 16
        %vm1486 = vc.u32 %v1478, %v1482
        %v1487 = vsel %vm1486, 1, 0
        %v1488 = vadd.s32 %v1478, %v1482
        %v1489 = vadd.s32 %v1481, %v1487
        %vm1490 = vc.u32 %v1488, %v1484
        %v1491 = vsel %vm1490, 1, 0
        %v1492 = vadd.s32 %v1488, %v1484
        %v1493 = vadd.s32 %v1489, %v1491
        %v1494 = vadd.s32 %v1493, %v1483
        %v1495 = vadd.s32 %v1494, %v1485
        %v1496 = vmul.u32 %v1451, %v1442
        %v1497 = vadd.s32 %v1473, %v1492
        %vm1498 = vc.u32 %v1473, %v1492
        %v1499 = vadd.s32 %v1495, 1
        %v1500 = vsel %vm1498, %v1499, %v1495
        %v1501 = vadd.s32 %v1496, %v1500
        %v1502 = vadd.s32 %v1501, 536870912
        %v1503 = vshrl.u32 %v1502, 30
        %v1504 = vshll.u32 %v1503, 30
        %v1505 = vsub.s32 %v1501, %v1504
        %vm1506 = vcmp.lt.s32.totalorder %v1505, 0
        %v1507 = vsub.s32 0, %v1505
        %v1508 = vsel %vm1506, %v1507, %v1505
        %v1509 = vclz %v1508
        %v1510 = vsub.s32 %v1509, 2
        %vm1511 = vcmp.gt.s32.totalorder 0, %v1510
        %v1512 = vsel %vm1511, 0, %v1510
        %v1513 = vsub.s32 32, %v1512
        %v1514 = vshll.u32 %v1505, %v1512
        %v1515 = vshrl.u32 %v1497, %v1513
        %v1516 = vor.u32 %v1514, %v1515
        %v1517 = vsub.s32 4294967266, %v1512
        %v1518 = vadd.s32 %v1517, 127
        %v1519 = vshll.u32 %v1518, 23
        %v1520 = vor.u32 4788187, %v1519
        %v1521 = vand.u32 2147483647, %v1520
        %v1523 = vcvt.s32.f32 %v1516
        %v1524 = vmul.f32 %v1523, %v1521
        %v1525 = vxor.u32 %v1524, 2147483648
        %v1526 = vsel %vm1405, %v1525, %v1524
        %v1527 = vsub.s32 4, %v1503
        %v1528 = vsel %vm1405, %v1527, %v1503
        %v1529 = vsel %vm1404, %v1247, %v1526
        %v1530 = vsel %vm1404, 0, %v1528
        %v1531 = vmul.f32 %v1529, %v1529
        %v1532 = vmul.f32 %v1531, -0.001358992
        %v1533 = vadd.f32 %v1532, 0.041655596
        %v1534 = vmul.f32 %v1531, %v1533
        %v1535 = vadd.f32 %v1534, -0.4999988
        %v1536 = vmul.f32 %v1531, %v1535
        %v1537 = vadd.f32 1.0, %v1536
        %v1538 = vmul.f32 %v1529, %v1529
        %v1539 = vmul.f32 %v1538, -0.00019511016
        %v1540 = vadd.f32 %v1539, 0.008332121
        %v1541 = vmul.f32 %v1538, %v1540
        %v1542 = vadd.f32 %v1541, -0.16666654
        %v1543 = vmul.f32 %v1538, %v1542
        %v1544 = vadd.f32 %v1543, 1.0
        %v1545 = vmul.f32 %v1544, %v1529
        %vm1546 = vweird.f32 %v1247
        %v1547 = vadd.s32 %v1530, 3
        %v1548 = vand.u32 %v1547, 3
        %vm1549 = vcmp.lt.s32.totalorder %v1548, 2
        %vm1550 = vcmp.eq.s32.totalorder %v1548, 0
        %v1551 = vxor.u32 %v1545, 2147483648
        %v1552 = vsel %vm1550, %v1537, %v1551
        %vm1553 = vcmp.eq.s32.totalorder %v1548, 2
        %v1554 = vxor.u32 %v1537, 2147483648
        %v1555 = vsel %vm1553, %v1554, %v1545
        %v1556 = vsel %vm1549, %v1552, %v1555
        %v1557 = vsel %vm1546, nan, %v1556
        %v1558 = vld [vmem:[%s467] sm:$0xff]
        %v1560 = vsel %vm859, %v1558, 0
        %1562 = vmatpush.msra.mxu0 0.0
        %1563 = vmatpush.msra.mxu0 0.0
        %1564 = vmatpush.msra.mxu0 0.0
        %1565 = vmatpush.msra.mxu0 0.0
        %1566 = vmatpush.msra.mxu0 0.0
        %1567 = vmatpush.msra.mxu0 0.0
        %1568 = vmatpush.msra.mxu0 0.0
        %1569 = vmatpush.msra.mxu0 0.0
        %1570 = vmatpush.msra.mxu0 0.0
        %1571 = vmatpush.msra.mxu0 0.0
        %1572 = vmatpush.msra.mxu0 0.0
        %1573 = vmatpush.msra.mxu0 0.0
        %1574 = vmatpush.msra.mxu0 0.0
        %1575 = vmatpush.msra.mxu0 0.0
        %1576 = vmatpush.msra.mxu0 %v1557
        %1577 = vmatpush.msra.mxu0 %v1402
        %1578 = vmatmul.f32.gmra.mxu0 %v1560
        %v1579 = vpop.f32.mrf.mxu0
        %v1580 = vadd.f32 0.0, %v1579
        %1581 = vdwg.mxu0
        %v1582 = vld [vmem:[%s1] sm:$0x1]
        %v1583 = vsub.f32 0.0, %v1582
        %v1584 = vld [vmem:[%s471] sm:$0xff]
        %v1585 = vand.u32 2147483647, %v1584
        %v1587 = vperm.slane %v1583, 0
        %1590 = vset.pattern.permute.xlu0 0
        %1591 = vperm.xlu0 %1590, %v1585
        %v1592 = vpop.permute.xlu0 %1591
        %v1594 = vmul.f32 %v1587, %v1592
        %v1595 = vmul.f32 %v1594, 1.442695
        %v1596 = vpow.pop %v1595
        %v1597 = vadd.f32 %v1596, 0.05
        %v1598 = vmul.f32 %v1580, %v1597
        %s1599 = smul.u32 %s26, 8
        %v1600 = vld [vmem:[%s413] sm:$0xff]
        %v1601 = vld [vmem:[%s413 + $0x8] sm:$0xff]
        %v1602 = vpack.c.bf16 %v1600, %v1600
        %v1603 = vpack.c.bf16 %v1601, %v1601
        %v1604 = vlaneseq
        %v1605 = vshrl.u32 %v1604, 7
        %v1606 = vadd.s32 %v1605, 8
        %v1607 = vadd.s32 %v1605, 16
        %v1608 = vadd.s32 %v1605, 24
        %v1609 = vadd.s32 %v1605, 32
        %v1610 = vadd.s32 %v1605, 40
        %v1611 = vadd.s32 %v1605, 48
        %v1612 = vadd.s32 %v1605, 56
        %v1613 = vadd.s32 %v1605, 64
        %v1614 = vadd.s32 %v1605, 72
        %v1615 = vadd.s32 %v1605, 80
        %v1616 = vadd.s32 %v1605, 88
        %v1617 = vadd.s32 %v1605, 96
        %v1618 = vadd.s32 %v1605, 104
        %v1619 = vadd.s32 %v1605, 112
        %v1620 = vadd.s32 %v1605, 120
        %v1621 = vlaneseq
        %v1622 = vand.u32 %v1621, 127
        %vm1623 = vcmp.ge.s32.totalorder %v1622, %v1605
        %vm1624 = vcmp.ge.s32.totalorder %v1622, %v1606
        %vm1625 = vcmp.ge.s32.totalorder %v1622, %v1607
        %vm1626 = vcmp.ge.s32.totalorder %v1622, %v1608
        %vm1627 = vcmp.ge.s32.totalorder %v1622, %v1609
        %vm1628 = vcmp.ge.s32.totalorder %v1622, %v1610
        %vm1629 = vcmp.ge.s32.totalorder %v1622, %v1611
        %vm1630 = vcmp.ge.s32.totalorder %v1622, %v1612
        %vm1631 = vcmp.ge.s32.totalorder %v1622, %v1613
        %vm1632 = vcmp.ge.s32.totalorder %v1622, %v1614
        %vm1633 = vcmp.ge.s32.totalorder %v1622, %v1615
        %vm1634 = vcmp.ge.s32.totalorder %v1622, %v1616
        %vm1635 = vcmp.ge.s32.totalorder %v1622, %v1617
        %vm1636 = vcmp.ge.s32.totalorder %v1622, %v1618
        %vm1637 = vcmp.ge.s32.totalorder %v1622, %v1619
        %vm1638 = vcmp.ge.s32.totalorder %v1622, %v1620
        %v1639 = vperm.slane %v1598, 0
        %1641 = vrot.lane.b32.xlu0 %v1639, 256
        %v1642 = vpop.permute.xlu0 %1641
        %s1644 = sor.u32 256, 8
        %1645 = vrot.lane.b32.xlu0 %v1639, %s1644
        %v1646 = vpop.permute.xlu0 %1645
        %s1648 = sor.u32 256, 16
        %1649 = vrot.lane.b32.xlu0 %v1639, %s1648
        %v1650 = vpop.permute.xlu0 %1649
        %s1652 = sor.u32 256, 24
        %1653 = vrot.lane.b32.xlu0 %v1639, %s1652
        %v1654 = vpop.permute.xlu0 %1653
        %s1656 = sor.u32 256, 32
        %1657 = vrot.lane.b32.xlu0 %v1639, %s1656
        %v1658 = vpop.permute.xlu0 %1657
        %s1660 = sor.u32 256, 40
        %1661 = vrot.lane.b32.xlu0 %v1639, %s1660
        %v1662 = vpop.permute.xlu0 %1661
        %s1664 = sor.u32 256, 48
        %1665 = vrot.lane.b32.xlu0 %v1639, %s1664
        %v1666 = vpop.permute.xlu0 %1665
        %s1668 = sor.u32 256, 56
        %1669 = vrot.lane.b32.xlu0 %v1639, %s1668
        %v1670 = vpop.permute.xlu0 %1669
        %s1672 = sor.u32 256, 64
        %1673 = vrot.lane.b32.xlu0 %v1639, %s1672
        %v1674 = vpop.permute.xlu0 %1673
        %s1676 = sor.u32 256, 72
        %1677 = vrot.lane.b32.xlu0 %v1639, %s1676
        %v1678 = vpop.permute.xlu0 %1677
        %s1680 = sor.u32 256, 80
        %1681 = vrot.lane.b32.xlu0 %v1639, %s1680
        %v1682 = vpop.permute.xlu0 %1681
        %s1684 = sor.u32 256, 88
        %1685 = vrot.lane.b32.xlu0 %v1639, %s1684
        %v1686 = vpop.permute.xlu0 %1685
        %s1688 = sor.u32 256, 96
        %1689 = vrot.lane.b32.xlu0 %v1639, %s1688
        %v1690 = vpop.permute.xlu0 %1689
        %s1692 = sor.u32 256, 104
        %1693 = vrot.lane.b32.xlu0 %v1639, %s1692
        %v1694 = vpop.permute.xlu0 %1693
        %s1696 = sor.u32 256, 112
        %1697 = vrot.lane.b32.xlu0 %v1639, %s1696
        %v1698 = vpop.permute.xlu0 %1697
        %s1700 = sor.u32 256, 120
        %1701 = vrot.lane.b32.xlu0 %v1639, %s1700
        %v1702 = vpop.permute.xlu0 %1701
        %v1703 = vsel %vm1623, %v1642, 0.0
        %v1704 = vsel %vm1624, %v1646, 0.0
        %v1705 = vsel %vm1625, %v1650, 0.0
        %v1706 = vsel %vm1626, %v1654, 0.0
        %v1707 = vsel %vm1627, %v1658, 0.0
        %v1708 = vsel %vm1628, %v1662, 0.0
        %v1709 = vsel %vm1629, %v1666, 0.0
        %v1710 = vsel %vm1630, %v1670, 0.0
        %v1711 = vsel %vm1631, %v1674, 0.0
        %v1712 = vsel %vm1632, %v1678, 0.0
        %v1713 = vsel %vm1633, %v1682, 0.0
        %v1714 = vsel %vm1634, %v1686, 0.0
        %v1715 = vsel %vm1635, %v1690, 0.0
        %v1716 = vsel %vm1636, %v1694, 0.0
        %v1717 = vsel %vm1637, %v1698, 0.0
        %v1718 = vsel %vm1638, %v1702, 0.0
        %v1719 = vpack.c.bf16 %v1704, %v1703
        %v1720 = vpack.c.bf16 %v1706, %v1705
        %v1721 = vpack.c.bf16 %v1708, %v1707
        %v1722 = vpack.c.bf16 %v1710, %v1709
        %v1723 = vpack.c.bf16 %v1712, %v1711
        %v1724 = vpack.c.bf16 %v1714, %v1713
        %v1725 = vpack.c.bf16 %v1716, %v1715
        %v1726 = vpack.c.bf16 %v1718, %v1717
        %s1727 = sld [smem:[#allocation3 + %s1599]]
        %v1728 = vstv %s1727
        %v1729 = vmul.f32 %v1600, %v1728
        %v1730 = vmul.f32 %v1601, %v1728
        %v1733 = vunpack.c.l.b16 %v1602
        %v1734 = vunpack.c.l.b16 %v1603
        %v1735 = vpack.c.b16 %v1733, %v1733
        %v1736 = vpack.c.b16 %v1734, %v1734
        %v1737 = vunpack.c.l.b16 %v1735
        %v1738 = vunpack.c.l.b16 %v1736
        %v1739 = vrot.slane %v1738, 7
        %vm1740 = vcmask 1041409
        %v1741 = vsel %vm1740, %v1739, %v1737
        %v1742 = vpack.c.b16 %v1741, %v1741
        %v1746 = vrot.slane %v1730, 7
        %v1747 = vsel %vm1740, %v1746, %v1729
        %1749 = vmatpush.bf16.msra.mxu0 %v1726
        %1750 = vmatpush.bf16.msra.mxu0 %v1725
        %1751 = vmatpush.bf16.msra.mxu0 %v1724
        %1752 = vmatpush.bf16.msra.mxu0 %v1723
        %1753 = vmatpush.bf16.msra.mxu0 %v1722
        %1754 = vmatpush.bf16.msra.mxu0 %v1721
        %1755 = vmatpush.bf16.msra.mxu0 %v1720
        %1756 = vmatpush.bf16.msra.mxu0 %v1719
        %1757 = vmatmul.bf16.gmra.mxu0 %v1742
        %v1758 = vpop.f32.mrf.mxu0
        %v1759 = vadd.f32 %v1747, %v1758
        %v1760 = vpop.f32.mrf.mxu0
        %1761 = vdwg.mxu0
        %v1763 = vrot.slane %v1759, 1
        %1765 = vst [vmem:[%s463] sm:$0x1] %v1759
        %1766 = vst [vmem:[%s463 + $0x8] sm:$0x1] %v1763
        %v1767 = vperm.slane %v1598, 1
        %1769 = vrot.lane.b32.xlu0 %v1767, 256
        %v1770 = vpop.permute.xlu0 %1769
        %s1772 = sor.u32 256, 8
        %1773 = vrot.lane.b32.xlu0 %v1767, %s1772
        %v1774 = vpop.permute.xlu0 %1773
        %s1776 = sor.u32 256, 16
        %1777 = vrot.lane.b32.xlu0 %v1767, %s1776
        %v1778 = vpop.permute.xlu0 %1777
        %s1780 = sor.u32 256, 24
        %1781 = vrot.lane.b32.xlu0 %v1767, %s1780
        %v1782 = vpop.permute.xlu0 %1781
        %s1784 = sor.u32 256, 32
        %1785 = vrot.lane.b32.xlu0 %v1767, %s1784
        %v1786 = vpop.permute.xlu0 %1785
        %s1788 = sor.u32 256, 40
        %1789 = vrot.lane.b32.xlu0 %v1767, %s1788
        %v1790 = vpop.permute.xlu0 %1789
        %s1792 = sor.u32 256, 48
        %1793 = vrot.lane.b32.xlu0 %v1767, %s1792
        %v1794 = vpop.permute.xlu0 %1793
        %s1796 = sor.u32 256, 56
        %1797 = vrot.lane.b32.xlu0 %v1767, %s1796
        %v1798 = vpop.permute.xlu0 %1797
        %s1800 = sor.u32 256, 64
        %1801 = vrot.lane.b32.xlu0 %v1767, %s1800
        %v1802 = vpop.permute.xlu0 %1801
        %s1804 = sor.u32 256, 72
        %1805 = vrot.lane.b32.xlu0 %v1767, %s1804
        %v1806 = vpop.permute.xlu0 %1805
        %s1808 = sor.u32 256, 80
        %1809 = vrot.lane.b32.xlu0 %v1767, %s1808
        %v1810 = vpop.permute.xlu0 %1809
        %s1812 = sor.u32 256, 88
        %1813 = vrot.lane.b32.xlu0 %v1767, %s1812
        %v1814 = vpop.permute.xlu0 %1813
        %s1816 = sor.u32 256, 96
        %1817 = vrot.lane.b32.xlu0 %v1767, %s1816
        %v1818 = vpop.permute.xlu0 %1817
        %s1820 = sor.u32 256, 104
        %1821 = vrot.lane.b32.xlu0 %v1767, %s1820
        %v1822 = vpop.permute.xlu0 %1821
        %s1824 = sor.u32 256, 112
        %1825 = vrot.lane.b32.xlu0 %v1767, %s1824
        %v1826 = vpop.permute.xlu0 %1825
        %s1828 = sor.u32 256, 120
        %1829 = vrot.lane.b32.xlu0 %v1767, %s1828
        %v1830 = vpop.permute.xlu0 %1829
        %v1831 = vsel %vm1623, %v1770, 0.0
        %v1832 = vsel %vm1624, %v1774, 0.0
        %v1833 = vsel %vm1625, %v1778, 0.0
        %v1834 = vsel %vm1626, %v1782, 0.0
        %v1835 = vsel %vm1627, %v1786, 0.0
        %v1836 = vsel %vm1628, %v1790, 0.0
        %v1837 = vsel %vm1629, %v1794, 0.0
        %v1838 = vsel %vm1630, %v1798, 0.0
        %v1839 = vsel %vm1631, %v1802, 0.0
        %v1840 = vsel %vm1632, %v1806, 0.0
        %v1841 = vsel %vm1633, %v1810, 0.0
        %v1842 = vsel %vm1634, %v1814, 0.0
        %v1843 = vsel %vm1635, %v1818, 0.0
        %v1844 = vsel %vm1636, %v1822, 0.0
        %v1845 = vsel %vm1637, %v1826, 0.0
        %v1846 = vsel %vm1638, %v1830, 0.0
        %v1847 = vpack.c.bf16 %v1832, %v1831
        %v1848 = vpack.c.bf16 %v1834, %v1833
        %v1849 = vpack.c.bf16 %v1836, %v1835
        %v1850 = vpack.c.bf16 %v1838, %v1837
        %v1851 = vpack.c.bf16 %v1840, %v1839
        %v1852 = vpack.c.bf16 %v1842, %v1841
        %v1853 = vpack.c.bf16 %v1844, %v1843
        %v1854 = vpack.c.bf16 %v1846, %v1845
        %s1855 = sadd.s32 %s1599, 1
        %s1856 = sld [smem:[#allocation3 + %s1855]]
        %v1857 = vstv %s1856
        %v1858 = vmul.f32 %v1600, %v1857
        %v1859 = vmul.f32 %v1601, %v1857
        %v1860 = vrot.slane %v1737, 1
        %v1861 = vsel %vm1740, %v1738, %v1860
        %v1862 = vpack.c.b16 %v1861, %v1861
        %v1866 = vrot.slane %v1858, 1
        %v1867 = vsel %vm1740, %v1859, %v1866
        %1869 = vmatpush.bf16.msra.mxu0 %v1854
        %1870 = vmatpush.bf16.msra.mxu0 %v1853
        %1871 = vmatpush.bf16.msra.mxu0 %v1852
        %1872 = vmatpush.bf16.msra.mxu0 %v1851
        %1873 = vmatpush.bf16.msra.mxu0 %v1850
        %1874 = vmatpush.bf16.msra.mxu0 %v1849
        %1875 = vmatpush.bf16.msra.mxu0 %v1848
        %1876 = vmatpush.bf16.msra.mxu0 %v1847
        %1877 = vmatmul.bf16.gmra.mxu0 %v1862
        %v1878 = vpop.f32.mrf.mxu0
        %v1879 = vadd.f32 %v1867, %v1878
        %v1880 = vpop.f32.mrf.mxu0
        %1881 = vdwg.mxu0
        %v1883 = vrot.slane %v1879, 1
        %1885 = vst [vmem:[%s463 + $0x1] sm:$0x1] %v1879
        %1886 = vst [vmem:[%s463 + $0x9] sm:$0x1] %v1883
        %v1887 = vperm.slane %v1598, 2
        %1889 = vrot.lane.b32.xlu0 %v1887, 256
        %v1890 = vpop.permute.xlu0 %1889
        %s1892 = sor.u32 256, 8
        %1893 = vrot.lane.b32.xlu0 %v1887, %s1892
        %v1894 = vpop.permute.xlu0 %1893
        %s1896 = sor.u32 256, 16
        %1897 = vrot.lane.b32.xlu0 %v1887, %s1896
        %v1898 = vpop.permute.xlu0 %1897
        %s1900 = sor.u32 256, 24
        %1901 = vrot.lane.b32.xlu0 %v1887, %s1900
        %v1902 = vpop.permute.xlu0 %1901
        %s1904 = sor.u32 256, 32
        %1905 = vrot.lane.b32.xlu0 %v1887, %s1904
        %v1906 = vpop.permute.xlu0 %1905
        %s1908 = sor.u32 256, 40
        %1909 = vrot.lane.b32.xlu0 %v1887, %s1908
        %v1910 = vpop.permute.xlu0 %1909
        %s1912 = sor.u32 256, 48
        %1913 = vrot.lane.b32.xlu0 %v1887, %s1912
        %v1914 = vpop.permute.xlu0 %1913
        %s1916 = sor.u32 256, 56
        %1917 = vrot.lane.b32.xlu0 %v1887, %s1916
        %v1918 = vpop.permute.xlu0 %1917
        %s1920 = sor.u32 256, 64
        %1921 = vrot.lane.b32.xlu0 %v1887, %s1920
        %v1922 = vpop.permute.xlu0 %1921
        %s1924 = sor.u32 256, 72
        %1925 = vrot.lane.b32.xlu0 %v1887, %s1924
        %v1926 = vpop.permute.xlu0 %1925
        %s1928 = sor.u32 256, 80
        %1929 = vrot.lane.b32.xlu0 %v1887, %s1928
        %v1930 = vpop.permute.xlu0 %1929
        %s1932 = sor.u32 256, 88
        %1933 = vrot.lane.b32.xlu0 %v1887, %s1932
        %v1934 = vpop.permute.xlu0 %1933
        %s1936 = sor.u32 256, 96
        %1937 = vrot.lane.b32.xlu0 %v1887, %s1936
        %v1938 = vpop.permute.xlu0 %1937
        %s1940 = sor.u32 256, 104
        %1941 = vrot.lane.b32.xlu0 %v1887, %s1940
        %v1942 = vpop.permute.xlu0 %1941
        %s1944 = sor.u32 256, 112
        %1945 = vrot.lane.b32.xlu0 %v1887, %s1944
        %v1946 = vpop.permute.xlu0 %1945
        %s1948 = sor.u32 256, 120
        %1949 = vrot.lane.b32.xlu0 %v1887, %s1948
        %v1950 = vpop.permute.xlu0 %1949
        %v1951 = vsel %vm1623, %v1890, 0.0
        %v1952 = vsel %vm1624, %v1894, 0.0
        %v1953 = vsel %vm1625, %v1898, 0.0
        %v1954 = vsel %vm1626, %v1902, 0.0
        %v1955 = vsel %vm1627, %v1906, 0.0
        %v1956 = vsel %vm1628, %v1910, 0.0
        %v1957 = vsel %vm1629, %v1914, 0.0
        %v1958 = vsel %vm1630, %v1918, 0.0
        %v1959 = vsel %vm1631, %v1922, 0.0
        %v1960 = vsel %vm1632, %v1926, 0.0
        %v1961 = vsel %vm1633, %v1930, 0.0
        %v1962 = vsel %vm1634, %v1934, 0.0
        %v1963 = vsel %vm1635, %v1938, 0.0
        %v1964 = vsel %vm1636, %v1942, 0.0
        %v1965 = vsel %vm1637, %v1946, 0.0
        %v1966 = vsel %vm1638, %v1950, 0.0
        %v1967 = vpack.c.bf16 %v1952, %v1951
        %v1968 = vpack.c.bf16 %v1954, %v1953
        %v1969 = vpack.c.bf16 %v1956, %v1955
        %v1970 = vpack.c.bf16 %v1958, %v1957
        %v1971 = vpack.c.bf16 %v1960, %v1959
        %v1972 = vpack.c.bf16 %v1962, %v1961
        %v1973 = vpack.c.bf16 %v1964, %v1963
        %v1974 = vpack.c.bf16 %v1966, %v1965
        %s1975 = sadd.s32 %s1599, 2
        %s1976 = sld [smem:[#allocation3 + %s1975]]
        %v1977 = vstv %s1976
        %v1978 = vmul.f32 %v1600, %v1977
        %v1979 = vmul.f32 %v1601, %v1977
        %v1980 = vrot.slane %v1737, 2
        %v1981 = vrot.slane %v1738, 1
        %v1982 = vsel %vm1740, %v1981, %v1980
        %v1983 = vpack.c.b16 %v1982, %v1982
        %v1987 = vrot.slane %v1978, 2
        %v1988 = vrot.slane %v1979, 1
        %v1989 = vsel %vm1740, %v1988, %v1987
        %1991 = vmatpush.bf16.msra.mxu0 %v1974
        %1992 = vmatpush.bf16.msra.mxu0 %v1973
        %1993 = vmatpush.bf16.msra.mxu0 %v1972
        %1994 = vmatpush.bf16.msra.mxu0 %v1971
        %1995 = vmatpush.bf16.msra.mxu0 %v1970
        %1996 = vmatpush.bf16.msra.mxu0 %v1969
        %1997 = vmatpush.bf16.msra.mxu0 %v1968
        %1998 = vmatpush.bf16.msra.mxu0 %v1967
        %1999 = vmatmul.bf16.gmra.mxu0 %v1983
        %v2000 = vpop.f32.mrf.mxu0
        %v2001 = vadd.f32 %v1989, %v2000
        %v2002 = vpop.f32.mrf.mxu0
        %2003 = vdwg.mxu0
        %v2005 = vrot.slane %v2001, 1
        %2007 = vst [vmem:[%s463 + $0x2] sm:$0x1] %v2001
        %2008 = vst [vmem:[%s463 + $0xa] sm:$0x1] %v2005
        %v2009 = vperm.slane %v1598, 3
        %2011 = vrot.lane.b32.xlu0 %v2009, 256
        %v2012 = vpop.permute.xlu0 %2011
        %s2014 = sor.u32 256, 8
        %2015 = vrot.lane.b32.xlu0 %v2009, %s2014
        %v2016 = vpop.permute.xlu0 %2015
        %s2018 = sor.u32 256, 16
        %2019 = vrot.lane.b32.xlu0 %v2009, %s2018
        %v2020 = vpop.permute.xlu0 %2019
        %s2022 = sor.u32 256, 24
        %2023 = vrot.lane.b32.xlu0 %v2009, %s2022
        %v2024 = vpop.permute.xlu0 %2023
        %s2026 = sor.u32 256, 32
        %2027 = vrot.lane.b32.xlu0 %v2009, %s2026
        %v2028 = vpop.permute.xlu0 %2027
        %s2030 = sor.u32 256, 40
        %2031 = vrot.lane.b32.xlu0 %v2009, %s2030
        %v2032 = vpop.permute.xlu0 %2031
        %s2034 = sor.u32 256, 48
        %2035 = vrot.lane.b32.xlu0 %v2009, %s2034
        %v2036 = vpop.permute.xlu0 %2035
        %s2038 = sor.u32 256, 56
        %2039 = vrot.lane.b32.xlu0 %v2009, %s2038
        %v2040 = vpop.permute.xlu0 %2039
        %s2042 = sor.u32 256, 64
        %2043 = vrot.lane.b32.xlu0 %v2009, %s2042
        %v2044 = vpop.permute.xlu0 %2043
        %s2046 = sor.u32 256, 72
        %2047 = vrot.lane.b32.xlu0 %v2009, %s2046
        %v2048 = vpop.permute.xlu0 %2047
        %s2050 = sor.u32 256, 80
        %2051 = vrot.lane.b32.xlu0 %v2009, %s2050
        %v2052 = vpop.permute.xlu0 %2051
        %s2054 = sor.u32 256, 88
        %2055 = vrot.lane.b32.xlu0 %v2009, %s2054
        %v2056 = vpop.permute.xlu0 %2055
        %s2058 = sor.u32 256, 96
        %2059 = vrot.lane.b32.xlu0 %v2009, %s2058
        %v2060 = vpop.permute.xlu0 %2059
        %s2062 = sor.u32 256, 104
        %2063 = vrot.lane.b32.xlu0 %v2009, %s2062
        %v2064 = vpop.permute.xlu0 %2063
        %s2066 = sor.u32 256, 112
        %2067 = vrot.lane.b32.xlu0 %v2009, %s2066
        %v2068 = vpop.permute.xlu0 %2067
        %s2070 = sor.u32 256, 120
        %2071 = vrot.lane.b32.xlu0 %v2009, %s2070
        %v2072 = vpop.permute.xlu0 %2071
        %v2073 = vsel %vm1623, %v2012, 0.0
        %v2074 = vsel %vm1624, %v2016, 0.0
        %v2075 = vsel %vm1625, %v2020, 0.0
        %v2076 = vsel %vm1626, %v2024, 0.0
        %v2077 = vsel %vm1627, %v2028, 0.0
        %v2078 = vsel %vm1628, %v2032, 0.0
        %v2079 = vsel %vm1629, %v2036, 0.0
        %v2080 = vsel %vm1630, %v2040, 0.0
        %v2081 = vsel %vm1631, %v2044, 0.0
        %v2082 = vsel %vm1632, %v2048, 0.0
        %v2083 = vsel %vm1633, %v2052, 0.0
        %v2084 = vsel %vm1634, %v2056, 0.0
        %v2085 = vsel %vm1635, %v2060, 0.0
        %v2086 = vsel %vm1636, %v2064, 0.0
        %v2087 = vsel %vm1637, %v2068, 0.0
        %v2088 = vsel %vm1638, %v2072, 0.0
        %v2089 = vpack.c.bf16 %v2074, %v2073
        %v2090 = vpack.c.bf16 %v2076, %v2075
        %v2091 = vpack.c.bf16 %v2078, %v2077
        %v2092 = vpack.c.bf16 %v2080, %v2079
        %v2093 = vpack.c.bf16 %v2082, %v2081
        %v2094 = vpack.c.bf16 %v2084, %v2083
        %v2095 = vpack.c.bf16 %v2086, %v2085
        %v2096 = vpack.c.bf16 %v2088, %v2087
        %s2097 = sadd.s32 %s1599, 3
        %s2098 = sld [smem:[#allocation3 + %s2097]]
        %v2099 = vstv %s2098
        %v2100 = vmul.f32 %v1600, %v2099
        %v2101 = vmul.f32 %v1601, %v2099
        %v2102 = vrot.slane %v1737, 3
        %v2103 = vrot.slane %v1738, 2
        %v2104 = vsel %vm1740, %v2103, %v2102
        %v2105 = vpack.c.b16 %v2104, %v2104
        %v2109 = vrot.slane %v2100, 3
        %v2110 = vrot.slane %v2101, 2
        %v2111 = vsel %vm1740, %v2110, %v2109
        %2113 = vmatpush.bf16.msra.mxu0 %v2096
        %2114 = vmatpush.bf16.msra.mxu0 %v2095
        %2115 = vmatpush.bf16.msra.mxu0 %v2094
        %2116 = vmatpush.bf16.msra.mxu0 %v2093
        %2117 = vmatpush.bf16.msra.mxu0 %v2092
        %2118 = vmatpush.bf16.msra.mxu0 %v2091
        %2119 = vmatpush.bf16.msra.mxu0 %v2090
        %2120 = vmatpush.bf16.msra.mxu0 %v2089
        %2121 = vmatmul.bf16.gmra.mxu0 %v2105
        %v2122 = vpop.f32.mrf.mxu0
        %v2123 = vadd.f32 %v2111, %v2122
        %v2124 = vpop.f32.mrf.mxu0
        %2125 = vdwg.mxu0
        %v2127 = vrot.slane %v2123, 1
        %2129 = vst [vmem:[%s463 + $0x3] sm:$0x1] %v2123
        %2130 = vst [vmem:[%s463 + $0xb] sm:$0x1] %v2127
        %v2131 = vperm.slane %v1598, 4
        %2133 = vrot.lane.b32.xlu0 %v2131, 256
        %v2134 = vpop.permute.xlu0 %2133
        %s2136 = sor.u32 256, 8
        %2137 = vrot.lane.b32.xlu0 %v2131, %s2136
        %v2138 = vpop.permute.xlu0 %2137
        %s2140 = sor.u32 256, 16
        %2141 = vrot.lane.b32.xlu0 %v2131, %s2140
        %v2142 = vpop.permute.xlu0 %2141
        %s2144 = sor.u32 256, 24
        %2145 = vrot.lane.b32.xlu0 %v2131, %s2144
        %v2146 = vpop.permute.xlu0 %2145
        %s2148 = sor.u32 256, 32
        %2149 = vrot.lane.b32.xlu0 %v2131, %s2148
        %v2150 = vpop.permute.xlu0 %2149
        %s2152 = sor.u32 256, 40
        %2153 = vrot.lane.b32.xlu0 %v2131, %s2152
        %v2154 = vpop.permute.xlu0 %2153
        %s2156 = sor.u32 256, 48
        %2157 = vrot.lane.b32.xlu0 %v2131, %s2156
        %v2158 = vpop.permute.xlu0 %2157
        %s2160 = sor.u32 256, 56
        %2161 = vrot.lane.b32.xlu0 %v2131, %s2160
        %v2162 = vpop.permute.xlu0 %2161
        %s2164 = sor.u32 256, 64
        %2165 = vrot.lane.b32.xlu0 %v2131, %s2164
        %v2166 = vpop.permute.xlu0 %2165
        %s2168 = sor.u32 256, 72
        %2169 = vrot.lane.b32.xlu0 %v2131, %s2168
        %v2170 = vpop.permute.xlu0 %2169
        %s2172 = sor.u32 256, 80
        %2173 = vrot.lane.b32.xlu0 %v2131, %s2172
        %v2174 = vpop.permute.xlu0 %2173
        %s2176 = sor.u32 256, 88
        %2177 = vrot.lane.b32.xlu0 %v2131, %s2176
        %v2178 = vpop.permute.xlu0 %2177
        %s2180 = sor.u32 256, 96
        %2181 = vrot.lane.b32.xlu0 %v2131, %s2180
        %v2182 = vpop.permute.xlu0 %2181
        %s2184 = sor.u32 256, 104
        %2185 = vrot.lane.b32.xlu0 %v2131, %s2184
        %v2186 = vpop.permute.xlu0 %2185
        %s2188 = sor.u32 256, 112
        %2189 = vrot.lane.b32.xlu0 %v2131, %s2188
        %v2190 = vpop.permute.xlu0 %2189
        %s2192 = sor.u32 256, 120
        %2193 = vrot.lane.b32.xlu0 %v2131, %s2192
        %v2194 = vpop.permute.xlu0 %2193
        %v2195 = vsel %vm1623, %v2134, 0.0
        %v2196 = vsel %vm1624, %v2138, 0.0
        %v2197 = vsel %vm1625, %v2142, 0.0
        %v2198 = vsel %vm1626, %v2146, 0.0
        %v2199 = vsel %vm1627, %v2150, 0.0
        %v2200 = vsel %vm1628, %v2154, 0.0
        %v2201 = vsel %vm1629, %v2158, 0.0
        %v2202 = vsel %vm1630, %v2162, 0.0
        %v2203 = vsel %vm1631, %v2166, 0.0
        %v2204 = vsel %vm1632, %v2170, 0.0
        %v2205 = vsel %vm1633, %v2174, 0.0
        %v2206 = vsel %vm1634, %v2178, 0.0
        %v2207 = vsel %vm1635, %v2182, 0.0
        %v2208 = vsel %vm1636, %v2186, 0.0
        %v2209 = vsel %vm1637, %v2190, 0.0
        %v2210 = vsel %vm1638, %v2194, 0.0
        %v2211 = vpack.c.bf16 %v2196, %v2195
        %v2212 = vpack.c.bf16 %v2198, %v2197
        %v2213 = vpack.c.bf16 %v2200, %v2199
        %v2214 = vpack.c.bf16 %v2202, %v2201
        %v2215 = vpack.c.bf16 %v2204, %v2203
        %v2216 = vpack.c.bf16 %v2206, %v2205
        %v2217 = vpack.c.bf16 %v2208, %v2207
        %v2218 = vpack.c.bf16 %v2210, %v2209
        %s2219 = sadd.s32 %s1599, 4
        %s2220 = sld [smem:[#allocation3 + %s2219]]
        %v2221 = vstv %s2220
        %v2222 = vmul.f32 %v1600, %v2221
        %v2223 = vmul.f32 %v1601, %v2221
        %v2224 = vrot.slane %v1737, 4
        %v2225 = vrot.slane %v1738, 3
        %v2226 = vsel %vm1740, %v2225, %v2224
        %v2227 = vpack.c.b16 %v2226, %v2226
        %v2231 = vrot.slane %v2222, 4
        %v2232 = vrot.slane %v2223, 3
        %v2233 = vsel %vm1740, %v2232, %v2231
        %2235 = vmatpush.bf16.msra.mxu0 %v2218
        %2236 = vmatpush.bf16.msra.mxu0 %v2217
        %2237 = vmatpush.bf16.msra.mxu0 %v2216
        %2238 = vmatpush.bf16.msra.mxu0 %v2215
        %2239 = vmatpush.bf16.msra.mxu0 %v2214
        %2240 = vmatpush.bf16.msra.mxu0 %v2213
        %2241 = vmatpush.bf16.msra.mxu0 %v2212
        %2242 = vmatpush.bf16.msra.mxu0 %v2211
        %2243 = vmatmul.bf16.gmra.mxu0 %v2227
        %v2244 = vpop.f32.mrf.mxu0
        %v2245 = vadd.f32 %v2233, %v2244
        %v2246 = vpop.f32.mrf.mxu0
        %2247 = vdwg.mxu0
        %v2249 = vrot.slane %v2245, 1
        %2251 = vst [vmem:[%s463 + $0x4] sm:$0x1] %v2245
        %2252 = vst [vmem:[%s463 + $0xc] sm:$0x1] %v2249
        %v2253 = vperm.slane %v1598, 5
        %2255 = vrot.lane.b32.xlu0 %v2253, 256
        %v2256 = vpop.permute.xlu0 %2255
        %s2258 = sor.u32 256, 8
        %2259 = vrot.lane.b32.xlu0 %v2253, %s2258
        %v2260 = vpop.permute.xlu0 %2259
        %s2262 = sor.u32 256, 16
        %2263 = vrot.lane.b32.xlu0 %v2253, %s2262
        %v2264 = vpop.permute.xlu0 %2263
        %s2266 = sor.u32 256, 24
        %2267 = vrot.lane.b32.xlu0 %v2253, %s2266
        %v2268 = vpop.permute.xlu0 %2267
        %s2270 = sor.u32 256, 32
        %2271 = vrot.lane.b32.xlu0 %v2253, %s2270
        %v2272 = vpop.permute.xlu0 %2271
        %s2274 = sor.u32 256, 40
        %2275 = vrot.lane.b32.xlu0 %v2253, %s2274
        %v2276 = vpop.permute.xlu0 %2275
        %s2278 = sor.u32 256, 48
        %2279 = vrot.lane.b32.xlu0 %v2253, %s2278
        %v2280 = vpop.permute.xlu0 %2279
        %s2282 = sor.u32 256, 56
        %2283 = vrot.lane.b32.xlu0 %v2253, %s2282
        %v2284 = vpop.permute.xlu0 %2283
        %s2286 = sor.u32 256, 64
        %2287 = vrot.lane.b32.xlu0 %v2253, %s2286
        %v2288 = vpop.permute.xlu0 %2287
        %s2290 = sor.u32 256, 72
        %2291 = vrot.lane.b32.xlu0 %v2253, %s2290
        %v2292 = vpop.permute.xlu0 %2291
        %s2294 = sor.u32 256, 80
        %2295 = vrot.lane.b32.xlu0 %v2253, %s2294
        %v2296 = vpop.permute.xlu0 %2295
        %s2298 = sor.u32 256, 88
        %2299 = vrot.lane.b32.xlu0 %v2253, %s2298
        %v2300 = vpop.permute.xlu0 %2299
        %s2302 = sor.u32 256, 96
        %2303 = vrot.lane.b32.xlu0 %v2253, %s2302
        %v2304 = vpop.permute.xlu0 %2303
        %s2306 = sor.u32 256, 104
        %2307 = vrot.lane.b32.xlu0 %v2253, %s2306
        %v2308 = vpop.permute.xlu0 %2307
        %s2310 = sor.u32 256, 112
        %2311 = vrot.lane.b32.xlu0 %v2253, %s2310
        %v2312 = vpop.permute.xlu0 %2311
        %s2314 = sor.u32 256, 120
        %2315 = vrot.lane.b32.xlu0 %v2253, %s2314
        %v2316 = vpop.permute.xlu0 %2315
        %v2317 = vsel %vm1623, %v2256, 0.0
        %v2318 = vsel %vm1624, %v2260, 0.0
        %v2319 = vsel %vm1625, %v2264, 0.0
        %v2320 = vsel %vm1626, %v2268, 0.0
        %v2321 = vsel %vm1627, %v2272, 0.0
        %v2322 = vsel %vm1628, %v2276, 0.0
        %v2323 = vsel %vm1629, %v2280, 0.0
        %v2324 = vsel %vm1630, %v2284, 0.0
        %v2325 = vsel %vm1631, %v2288, 0.0
        %v2326 = vsel %vm1632, %v2292, 0.0
        %v2327 = vsel %vm1633, %v2296, 0.0
        %v2328 = vsel %vm1634, %v2300, 0.0
        %v2329 = vsel %vm1635, %v2304, 0.0
        %v2330 = vsel %vm1636, %v2308, 0.0
        %v2331 = vsel %vm1637, %v2312, 0.0
        %v2332 = vsel %vm1638, %v2316, 0.0
        %v2333 = vpack.c.bf16 %v2318, %v2317
        %v2334 = vpack.c.bf16 %v2320, %v2319
        %v2335 = vpack.c.bf16 %v2322, %v2321
        %v2336 = vpack.c.bf16 %v2324, %v2323
        %v2337 = vpack.c.bf16 %v2326, %v2325
        %v2338 = vpack.c.bf16 %v2328, %v2327
        %v2339 = vpack.c.bf16 %v2330, %v2329
        %v2340 = vpack.c.bf16 %v2332, %v2331
        %s2341 = sadd.s32 %s1599, 5
        %s2342 = sld [smem:[#allocation3 + %s2341]]
        %v2343 = vstv %s2342
        %v2344 = vmul.f32 %v1600, %v2343
        %v2345 = vmul.f32 %v1601, %v2343
        %v2346 = vrot.slane %v1737, 5
        %v2347 = vrot.slane %v1738, 4
        %v2348 = vsel %vm1740, %v2347, %v2346
        %v2349 = vpack.c.b16 %v2348, %v2348
        %v2353 = vrot.slane %v2344, 5
        %v2354 = vrot.slane %v2345, 4
        %v2355 = vsel %vm1740, %v2354, %v2353
        %2357 = vmatpush.bf16.msra.mxu0 %v2340
        %2358 = vmatpush.bf16.msra.mxu0 %v2339
        %2359 = vmatpush.bf16.msra.mxu0 %v2338
        %2360 = vmatpush.bf16.msra.mxu0 %v2337
        %2361 = vmatpush.bf16.msra.mxu0 %v2336
        %2362 = vmatpush.bf16.msra.mxu0 %v2335
        %2363 = vmatpush.bf16.msra.mxu0 %v2334
        %2364 = vmatpush.bf16.msra.mxu0 %v2333
        %2365 = vmatmul.bf16.gmra.mxu0 %v2349
        %v2366 = vpop.f32.mrf.mxu0
        %v2367 = vadd.f32 %v2355, %v2366
        %v2368 = vpop.f32.mrf.mxu0
        %2369 = vdwg.mxu0
        %v2371 = vrot.slane %v2367, 1
        %2373 = vst [vmem:[%s463 + $0x5] sm:$0x1] %v2367
        %2374 = vst [vmem:[%s463 + $0xd] sm:$0x1] %v2371
        %v2375 = vperm.slane %v1598, 6
        %2377 = vrot.lane.b32.xlu0 %v2375, 256
        %v2378 = vpop.permute.xlu0 %2377
        %s2380 = sor.u32 256, 8
        %2381 = vrot.lane.b32.xlu0 %v2375, %s2380
        %v2382 = vpop.permute.xlu0 %2381
        %s2384 = sor.u32 256, 16
        %2385 = vrot.lane.b32.xlu0 %v2375, %s2384
        %v2386 = vpop.permute.xlu0 %2385
        %s2388 = sor.u32 256, 24
        %2389 = vrot.lane.b32.xlu0 %v2375, %s2388
        %v2390 = vpop.permute.xlu0 %2389
        %s2392 = sor.u32 256, 32
        %2393 = vrot.lane.b32.xlu0 %v2375, %s2392
        %v2394 = vpop.permute.xlu0 %2393
        %s2396 = sor.u32 256, 40
        %2397 = vrot.lane.b32.xlu0 %v2375, %s2396
        %v2398 = vpop.permute.xlu0 %2397
        %s2400 = sor.u32 256, 48
        %2401 = vrot.lane.b32.xlu0 %v2375, %s2400
        %v2402 = vpop.permute.xlu0 %2401
        %s2404 = sor.u32 256, 56
        %2405 = vrot.lane.b32.xlu0 %v2375, %s2404
        %v2406 = vpop.permute.xlu0 %2405
        %s2408 = sor.u32 256, 64
        %2409 = vrot.lane.b32.xlu0 %v2375, %s2408
        %v2410 = vpop.permute.xlu0 %2409
        %s2412 = sor.u32 256, 72
        %2413 = vrot.lane.b32.xlu0 %v2375, %s2412
        %v2414 = vpop.permute.xlu0 %2413
        %s2416 = sor.u32 256, 80
        %2417 = vrot.lane.b32.xlu0 %v2375, %s2416
        %v2418 = vpop.permute.xlu0 %2417
        %s2420 = sor.u32 256, 88
        %2421 = vrot.lane.b32.xlu0 %v2375, %s2420
        %v2422 = vpop.permute.xlu0 %2421
        %s2424 = sor.u32 256, 96
        %2425 = vrot.lane.b32.xlu0 %v2375, %s2424
        %v2426 = vpop.permute.xlu0 %2425
        %s2428 = sor.u32 256, 104
        %2429 = vrot.lane.b32.xlu0 %v2375, %s2428
        %v2430 = vpop.permute.xlu0 %2429
        %s2432 = sor.u32 256, 112
        %2433 = vrot.lane.b32.xlu0 %v2375, %s2432
        %v2434 = vpop.permute.xlu0 %2433
        %s2436 = sor.u32 256, 120
        %2437 = vrot.lane.b32.xlu0 %v2375, %s2436
        %v2438 = vpop.permute.xlu0 %2437
        %v2439 = vsel %vm1623, %v2378, 0.0
        %v2440 = vsel %vm1624, %v2382, 0.0
        %v2441 = vsel %vm1625, %v2386, 0.0
        %v2442 = vsel %vm1626, %v2390, 0.0
        %v2443 = vsel %vm1627, %v2394, 0.0
        %v2444 = vsel %vm1628, %v2398, 0.0
        %v2445 = vsel %vm1629, %v2402, 0.0
        %v2446 = vsel %vm1630, %v2406, 0.0
        %v2447 = vsel %vm1631, %v2410, 0.0
        %v2448 = vsel %vm1632, %v2414, 0.0
        %v2449 = vsel %vm1633, %v2418, 0.0
        %v2450 = vsel %vm1634, %v2422, 0.0
        %v2451 = vsel %vm1635, %v2426, 0.0
        %v2452 = vsel %vm1636, %v2430, 0.0
        %v2453 = vsel %vm1637, %v2434, 0.0
        %v2454 = vsel %vm1638, %v2438, 0.0
        %v2455 = vpack.c.bf16 %v2440, %v2439
        %v2456 = vpack.c.bf16 %v2442, %v2441
        %v2457 = vpack.c.bf16 %v2444, %v2443
        %v2458 = vpack.c.bf16 %v2446, %v2445
        %v2459 = vpack.c.bf16 %v2448, %v2447
        %v2460 = vpack.c.bf16 %v2450, %v2449
        %v2461 = vpack.c.bf16 %v2452, %v2451
        %v2462 = vpack.c.bf16 %v2454, %v2453
        %s2463 = sadd.s32 %s1599, 6
        %s2464 = sld [smem:[#allocation3 + %s2463]]
        %v2465 = vstv %s2464
        %v2466 = vmul.f32 %v1600, %v2465
        %v2467 = vmul.f32 %v1601, %v2465
        %v2468 = vrot.slane %v1737, 6
        %v2469 = vrot.slane %v1738, 5
        %v2470 = vsel %vm1740, %v2469, %v2468
        %v2471 = vpack.c.b16 %v2470, %v2470
        %v2475 = vrot.slane %v2466, 6
        %v2476 = vrot.slane %v2467, 5
        %v2477 = vsel %vm1740, %v2476, %v2475
        %2479 = vmatpush.bf16.msra.mxu0 %v2462
        %2480 = vmatpush.bf16.msra.mxu0 %v2461
        %2481 = vmatpush.bf16.msra.mxu0 %v2460
        %2482 = vmatpush.bf16.msra.mxu0 %v2459
        %2483 = vmatpush.bf16.msra.mxu0 %v2458
        %2484 = vmatpush.bf16.msra.mxu0 %v2457
        %2485 = vmatpush.bf16.msra.mxu0 %v2456
        %2486 = vmatpush.bf16.msra.mxu0 %v2455
        %2487 = vmatmul.bf16.gmra.mxu0 %v2471
        %v2488 = vpop.f32.mrf.mxu0
        %v2489 = vadd.f32 %v2477, %v2488
        %v2490 = vpop.f32.mrf.mxu0
        %2491 = vdwg.mxu0
        %v2493 = vrot.slane %v2489, 1
        %2495 = vst [vmem:[%s463 + $0x6] sm:$0x1] %v2489
        %2496 = vst [vmem:[%s463 + $0xe] sm:$0x1] %v2493
        %v2497 = vperm.slane %v1598, 7
        %2499 = vrot.lane.b32.xlu0 %v2497, 256
        %v2500 = vpop.permute.xlu0 %2499
        %s2502 = sor.u32 256, 8
        %2503 = vrot.lane.b32.xlu0 %v2497, %s2502
        %v2504 = vpop.permute.xlu0 %2503
        %s2506 = sor.u32 256, 16
        %2507 = vrot.lane.b32.xlu0 %v2497, %s2506
        %v2508 = vpop.permute.xlu0 %2507
        %s2510 = sor.u32 256, 24
        %2511 = vrot.lane.b32.xlu0 %v2497, %s2510
        %v2512 = vpop.permute.xlu0 %2511
        %s2514 = sor.u32 256, 32
        %2515 = vrot.lane.b32.xlu0 %v2497, %s2514
        %v2516 = vpop.permute.xlu0 %2515
        %s2518 = sor.u32 256, 40
        %2519 = vrot.lane.b32.xlu0 %v2497, %s2518
        %v2520 = vpop.permute.xlu0 %2519
        %s2522 = sor.u32 256, 48
        %2523 = vrot.lane.b32.xlu0 %v2497, %s2522
        %v2524 = vpop.permute.xlu0 %2523
        %s2526 = sor.u32 256, 56
        %2527 = vrot.lane.b32.xlu0 %v2497, %s2526
        %v2528 = vpop.permute.xlu0 %2527
        %s2530 = sor.u32 256, 64
        %2531 = vrot.lane.b32.xlu0 %v2497, %s2530
        %v2532 = vpop.permute.xlu0 %2531
        %s2534 = sor.u32 256, 72
        %2535 = vrot.lane.b32.xlu0 %v2497, %s2534
        %v2536 = vpop.permute.xlu0 %2535
        %s2538 = sor.u32 256, 80
        %2539 = vrot.lane.b32.xlu0 %v2497, %s2538
        %v2540 = vpop.permute.xlu0 %2539
        %s2542 = sor.u32 256, 88
        %2543 = vrot.lane.b32.xlu0 %v2497, %s2542
        %v2544 = vpop.permute.xlu0 %2543
        %s2546 = sor.u32 256, 96
        %2547 = vrot.lane.b32.xlu0 %v2497, %s2546
        %v2548 = vpop.permute.xlu0 %2547
        %s2550 = sor.u32 256, 104
        %2551 = vrot.lane.b32.xlu0 %v2497, %s2550
        %v2552 = vpop.permute.xlu0 %2551
        %s2554 = sor.u32 256, 112
        %2555 = vrot.lane.b32.xlu0 %v2497, %s2554
        %v2556 = vpop.permute.xlu0 %2555
        %s2558 = sor.u32 256, 120
        %2559 = vrot.lane.b32.xlu0 %v2497, %s2558
        %v2560 = vpop.permute.xlu0 %2559
        %v2561 = vsel %vm1623, %v2500, 0.0
        %v2562 = vsel %vm1624, %v2504, 0.0
        %v2563 = vsel %vm1625, %v2508, 0.0
        %v2564 = vsel %vm1626, %v2512, 0.0
        %v2565 = vsel %vm1627, %v2516, 0.0
        %v2566 = vsel %vm1628, %v2520, 0.0
        %v2567 = vsel %vm1629, %v2524, 0.0
        %v2568 = vsel %vm1630, %v2528, 0.0
        %v2569 = vsel %vm1631, %v2532, 0.0
        %v2570 = vsel %vm1632, %v2536, 0.0
        %v2571 = vsel %vm1633, %v2540, 0.0
        %v2572 = vsel %vm1634, %v2544, 0.0
        %v2573 = vsel %vm1635, %v2548, 0.0
        %v2574 = vsel %vm1636, %v2552, 0.0
        %v2575 = vsel %vm1637, %v2556, 0.0
        %v2576 = vsel %vm1638, %v2560, 0.0
        %v2577 = vpack.c.bf16 %v2562, %v2561
        %v2578 = vpack.c.bf16 %v2564, %v2563
        %v2579 = vpack.c.bf16 %v2566, %v2565
        %v2580 = vpack.c.bf16 %v2568, %v2567
        %v2581 = vpack.c.bf16 %v2570, %v2569
        %v2582 = vpack.c.bf16 %v2572, %v2571
        %v2583 = vpack.c.bf16 %v2574, %v2573
        %v2584 = vpack.c.bf16 %v2576, %v2575
        %s2585 = sadd.s32 %s1599, 7
        %s2586 = sld [smem:[#allocation3 + %s2585]]
        %v2587 = vstv %s2586
        %v2588 = vmul.f32 %v1600, %v2587
        %v2589 = vmul.f32 %v1601, %v2587
        %v2590 = vrot.slane %v1737, 7
        %v2591 = vrot.slane %v1738, 6
        %v2592 = vsel %vm1740, %v2591, %v2590
        %v2593 = vpack.c.b16 %v2592, %v2592
        %v2597 = vrot.slane %v2588, 7
        %v2598 = vrot.slane %v2589, 6
        %v2599 = vsel %vm1740, %v2598, %v2597
        %2601 = vmatpush.bf16.msra.mxu0 %v2584
        %2602 = vmatpush.bf16.msra.mxu0 %v2583
        %2603 = vmatpush.bf16.msra.mxu0 %v2582
        %2604 = vmatpush.bf16.msra.mxu0 %v2581
        %2605 = vmatpush.bf16.msra.mxu0 %v2580
        %2606 = vmatpush.bf16.msra.mxu0 %v2579
        %2607 = vmatpush.bf16.msra.mxu0 %v2578
        %2608 = vmatpush.bf16.msra.mxu0 %v2577
        %2609 = vmatmul.bf16.gmra.mxu0 %v2593
        %v2610 = vpop.f32.mrf.mxu0
        %v2611 = vadd.f32 %v2599, %v2610
        %v2612 = vpop.f32.mrf.mxu0
        %2613 = vdwg.mxu0
        %v2615 = vrot.slane %v2611, 1
        %2617 = vst [vmem:[%s463 + $0x7] sm:$0x1] %v2611
        %2618 = vst [vmem:[%s463 + $0xf] sm:$0x1] %v2615
        %s2619 = sand.u32 %s280, 1
        %s2620 = scalar_lea.sflag [#allocation4], %s2619
        %s2621 = sand.u32 %s280, 1
        %s2622 = smul.addr %s2621, 16
        %s2623 = scalar_lea.vmem [#allocation6], %s2622
        // Predicated region
        $region107: #{tpu_custom_call.1} parent=97 // pred_check
          %p2624 = pneg %p290
        $region108: #{tpu_custom_call.1} parent=97 // pred_check_branch
          %2626 = sbr.rel (%p2624) target = $region110
        $region109: #{tpu_custom_call.1} parent=97 // pred_region
          %2628 = vsyncadd %s2620, 0
          %s2629 = smul.addr %s26, 8
          %s2630 = scalar_lea.hbm %s11, %s2629
          %s2631 = sshll.u32 %s2623, 4
          %s2632 = int_to_ptr.vmem [resolvable:$true] %s2631
          %s2633 = sshll.u32 %s2630, 4
          %s2634 = int_to_ptr.hbm [resolvable:$true] %s2633
          %2639 = dma.vmem_to_hbm [thread:$0]  %s2632, 256, %s2634, %s2620, 128, 256, 8
        $region110: #{tpu_custom_call.1} parent=97 // pred_fallthru
          _
      $region98: #{tpu_custom_call.1} parent=5 // pred_fallthru
        _
      %p2640 = scmp.le.s32.totalorder 2, %s21
      // Predicated region
      $region111: #{tpu_custom_call.1} parent=5 // pred_check
        %p2641 = pneg %p2640
      $region112: #{tpu_custom_call.1} parent=5 // pred_check_branch
        %2643 = sbr.rel (%p2641) target = $region114
      $region113: #{tpu_custom_call.1} parent=5 // pred_region
        %s2644 = ssub.s32 %s21, 2
        // Predicated region
        $region115: #{tpu_custom_call.1} parent=113 // pred_check
          %p2645 = pneg %p296
        $region116: #{tpu_custom_call.1} parent=113 // pred_check_branch
          %2647 = sbr.rel (%p2645) target = $region118
        $region117: #{tpu_custom_call.1} parent=113 // pred_region
          %s2648 = sand.u32 %s281, 1
          %s2649 = scalar_lea.sflag [#allocation4], %s2648
          %s2650 = sand.u32 %s281, 1
          %s2651 = smul.addr %s2650, 16
          %s2652 = scalar_lea.vmem [#allocation6], %s2651
          %2654 = dma.done %s2649, 256
        $region118: #{tpu_custom_call.1} parent=113 // pred_fallthru
          _
      $region114: #{tpu_custom_call.1} parent=5 // pred_fallthru
        _
    $region6: #{tpu_custom_call.1} parent=1 // loop_footer
      %s25 = sadd.s32 1, %s21
    $region7: #{tpu_custom_call.1} parent=1 // loop_footer_branch
      %20 = sbr.rel target = $region3
    $region8: #{tpu_custom_call.1} parent=1 // loop_exit
      _
    %2655 = vsyncpa [#allocation4], 1
    %s2656 = scalar_lea.sflag [#allocation4], 1
    %2657 = vsyncpa %s2656, 1
    %2658 = vsyncpa [#allocation5], 1
    %s2659 = scalar_lea.sflag [#allocation5], 1
    %2660 = vsyncpa %s2659, 1

</llo_original>
